<compile_context>
chip_gen: v7x
topology: tpu7x:2x2x1
jax: 0.10.0
libtpu: 0.0.40
codegen_flags: <defaults>
</compile_context>

<pallas_src>
from functools import partial

import numpy as np
import jax
import jax.numpy as jnp
from jax import lax
from jax.experimental import pallas as pl
from jax.experimental.pallas import tpu as pltpu

_INV_SQRT2 = 0.7071067811865476
_DOT_PREC = lax.Precision.HIGHEST   # exact f32 MXU passes (matches the f32 reference)


def _cdiv(a, b):
    return -(-a // b)


def _round_up(a, b):
    return _cdiv(a, b) * b


def _same_pads(size, k, s):
    out = _cdiv(size, s)                      # ceil(size / s)
    pad = max((out - 1) * s + k - size, 0)    # TF / Conv3dSame total padding
    return out, (pad // 2, pad - pad // 2)


def _num_tensorcores():
    """Trace-time chip check: v7x has 2 TensorCores per chip, v5e/v6e have 1."""
    try:
        kind = jax.devices()[0].device_kind.lower()
        if "v7" in kind or "7x" in kind:
            return 2
    except Exception:
        pass
    return 1


# ---------------------------------------------------------------------------
# Fused kernel: GDN + conv1(all taps) + shortcut + conv2 + GELU + conv3 + add
# ---------------------------------------------------------------------------
def _make_fused_kernel(cout, gelu_approx):
    def kernel(x_ref, gbig_ref, beta_ref, wms_ref, bms_ref,
               w2_ref, b2_ref, w3_ref, b3_ref, o_ref):
        x = x_ref[0]                                    # (k3*Cin, ts), lane-dense

        # --- GDN: block-diagonal denominator matmul on the MXU, rsqrt on the EUP ---
        denom = jnp.dot(gbig_ref[...], x * x,
                        preferred_element_type=jnp.float32, precision=_DOT_PREC)
        denom = jnp.maximum(denom + beta_ref[...], 1e-20)   # padded zero taps stay 0
        xg = x * lax.rsqrt(denom)                       # full 8-sublane vregs

        # --- conv1 (k^3 taps) + strided 1x1x1 shortcut: ONE matmul ---
        hms = jnp.dot(wms_ref[...], xg,
                      preferred_element_type=jnp.float32,
                      precision=_DOT_PREC) + bms_ref[...]        # (2*Cout, ts)

        # --- 1x1x1 conv2 (weight zero over the shortcut rows) + GELU ---
        h2 = jnp.dot(w2_ref[...], hms,
                     preferred_element_type=jnp.float32,
                     precision=_DOT_PREC) + b2_ref[...]          # (Chid, ts)
        if gelu_approx:
            c = 0.7978845608028654  # sqrt(2/pi) -- tanh GELU rides the EUP slot
            h2 = 0.5 * h2 * (1.0 + jnp.tanh(c * (h2 + 0.044715 * h2 * h2 * h2)))
        else:
            h2 = 0.5 * h2 * (1.0 + lax.erf(h2 * _INV_SQRT2))     # torch-exact GELU

        # --- 1x1x1 conv3 + residual (shortcut rows of hms) ---
        h3 = jnp.dot(w3_ref[...], h2,
                     preferred_element_type=jnp.float32,
                     precision=_DOT_PREC)[:cout]
        o_ref[0] = h3 + b3_ref[...] + hms[cout:2 * cout]

    return kernel


# ---------------------------------------------------------------------------
# Module forward
# ---------------------------------------------------------------------------
@partial(jax.jit, static_argnames=("kernel_size", "stride", "ts_cap", "gelu_approx"))
def downsampling_resblock3d(x, params, kernel_size, stride, ts_cap=8192,
                            gelu_approx=False):
    # x: (N, C_in, D, H, W)  -- PyTorch NCDHW
    N, Cin, D, H, W = x.shape
    k, s = kernel_size, stride
    k3 = k ** 3
    Cout = params["conv1_w"].shape[0]
    Chid = params["conv2_w"].shape[0]

    Do, (pd0, pd1) = _same_pads(D, k, s)
    Ho, (ph0, ph1) = _same_pads(H, k, s)
    Wo, (pw0, pw1) = _same_pads(W, k, s)
    S_out = Do * Ho * Wo

    # Shortcut (1x1x1, stride s, SAME => no pad) must sample exactly the conv1 tap
    # at offset (pd0, ph0, pw0) of the SAME-padded input.
    assert pd0 < k and ph0 < k and pw0 < k
    assert (Do - 1) * s <= D - 1 and (Ho - 1) * s <= H - 1 and (Wo - 1) * s <= W - 1
    t0 = (pd0 * k + ph0) * k + pw0

    # Lane tile: multiple of 128, as large as ts_cap allows.  Only force a >=2-step
    # split on multi-TensorCore chips (v7x); on v5e/v6e it just adds step overhead.
    s128 = _round_up(S_out, 128)
    ts = max(128, min(ts_cap, s128))
    if _num_tensorcores() >= 2 and N * _cdiv(s128, ts) < 2 and s128 > 128:
        ts = _round_up(_cdiv(S_out, 2), 128)
    S_pad = _round_up(S_out, ts)
    n_sblk = S_pad // ts

    # SAME zero padding BEFORE GDN (GDN of an all-zero position is 0; the eps clamp in
    # the kernel keeps that true even if beta reaches 0), then stack the k^3 strided
    # taps into ONE array: row index = tap*Cin + channel, spatial on the lane axis.
    xp = jnp.pad(x, ((0, 0), (0, 0), (pd0, pd1), (ph0, ph1), (pw0, pw1)))
    taps = []
    for kd in range(k):
        for kh in range(k):
            for kw in range(k):
                taps.append(
                    xp[:, :,
                       kd:kd + (Do - 1) * s + 1:s,
                       kh:kh + (Ho - 1) * s + 1:s,
                       kw:kw + (Wo - 1) * s + 1:s].reshape(N, Cin, S_out))
    xstack = jnp.stack(taps, axis=1).reshape(N, k3 * Cin, S_out)
    if S_pad != S_out:
        xstack = jnp.pad(xstack, ((0, 0), (0, 0), (0, S_pad - S_out)))

    # --- packed constants ------------------------------------------------------
    gamma = params["gdn_gamma"].astype(jnp.float32)          # (Cin, Cin)
    beta = params["gdn_beta"].astype(jnp.float32)            # (Cin,)
    gbig = jnp.kron(jnp.eye(k3, dtype=jnp.float32), gamma)   # (k3*Cin, k3*Cin)
    beta_t = jnp.tile(beta, k3).reshape(k3 * Cin, 1)

    # conv1 weights as (Cout, k3*Cin) matching the tap-major row layout of xstack.
    w1big = jnp.transpose(params["conv1_w"], (2, 3, 4, 1, 0)).reshape(k3 * Cin, Cout).T
    ws = params["shortcut_w"].reshape(Cout, Cin)
    wsbig = jnp.zeros((Cout, k3 * Cin), jnp.float32)
    wsbig = wsbig.at[:, t0 * Cin:(t0 + 1) * Cin].set(ws)      # shortcut = tap t0 only
    wms = jnp.concatenate([w1big, wsbig], axis=0)             # (2*Cout, k3*Cin)
    bms = jnp.concatenate([params["conv1_b"], params["shortcut_b"]]).reshape(2 * Cout, 1)

    w2 = params["conv2_w"].reshape(Chid, Cout)
    w2pad = jnp.zeros((Chid, 2 * Cout), jnp.float32).at[:, :Cout].set(w2)
    b2 = params["conv2_b"].reshape(Chid, 1)

    Cout_r = _round_up(Cout, 8)                               # MXU-friendly row pad
    w3 = params["conv3_w"].reshape(Cout, Chid)
    w3pad = jnp.zeros((Cout_r, Chid), jnp.float32).at[:Cout].set(w3)
    b3 = params["conv3_b"].reshape(Cout, 1)

    # --- pallas_call -----------------------------------------------------------
    x_spec = pl.BlockSpec((1, k3 * Cin, ts), lambda n, j: (n, 0, j))

    def _const_spec(shape):
        return pl.BlockSpec(shape, lambda n, j: (0,) * len(shape))

    out = pl.pallas_call(
        _make_fused_kernel(Cout, gelu_approx),
        out_shape=jax.ShapeDtypeStruct((N, Cout, S_pad), jnp.float32),
        grid=(N, n_sblk),
        in_specs=[
            x_spec,                                 # stacked taps
            _const_spec((k3 * Cin, k3 * Cin)),      # block-diag GDN gamma
            _const_spec((k3 * Cin, 1)),             # tiled GDN beta
            _const_spec((2 * Cout, k3 * Cin)),      # [conv1 ; shortcut] weights
            _const_spec((2 * Cout, 1)),             # [conv1 ; shortcut] biases
            _const_spec((Chid, 2 * Cout)),          # conv2 weight (shortcut cols = 0)
            _const_spec((Chid, 1)),                 # conv2 bias
            _const_spec((Cout_r, Chid)),            # conv3 weight (row-padded to 8)
            _const_spec((Cout, 1)),                 # conv3 bias
        ],
        out_specs=pl.BlockSpec((1, Cout, ts), lambda n, j: (n, 0, j)),
        compiler_params=pltpu.CompilerParams(
            dimension_semantics=("parallel", "parallel")),
    )(xstack, gbig, beta_t, wms, bms, w2pad, b2, w3pad, b3)

    return out[:, :, :S_out].reshape(N, Cout, Do, Ho, Wo)


# ---------------------------------------------------------------------------
# Pure-JAX reference (for correctness check)
# ---------------------------------------------------------------------------
def ref_forward(x, params, k, s):
    gamma, beta = params["gdn_gamma"], params["gdn_beta"]
    denom = jnp.einsum("ncdhw,kc->nkdhw", x * x, gamma,
                       precision=lax.Precision.HIGHEST) + beta[None, :, None, None, None]
    xg = x * lax.rsqrt(denom)

    def conv(inp, w, b, stride, pads):
        dn = lax.conv_dimension_numbers(inp.shape, w.shape, ("NCDHW", "OIDHW", "NCDHW"))
        y = lax.conv_general_dilated(inp, w, (stride,) * 3, padding=pads,
                                     dimension_numbers=dn,
                                     precision=lax.Precision.HIGHEST)
        return y + b[None, :, None, None, None]

    _, pd = _same_pads(x.shape[2], k, s)
    _, ph = _same_pads(x.shape[3], k, s)
    _, pw = _same_pads(x.shape[4], k, s)
    sc = conv(xg, params["shortcut_w"], params["shortcut_b"], s, [(0, 0)] * 3)
    h = conv(xg, params["conv1_w"], params["conv1_b"], s, [pd, ph, pw])
    h = conv(h, params["conv2_w"], params["conv2_b"], 1, [(0, 0)] * 3)
    h = jax.nn.gelu(h, approximate=False)
    h = conv(h, params["conv3_w"], params["conv3_b"], 1, [(0, 0)] * 3)
    return h + sc


# ---------------------------------------------------------------------------
if __name__ == "__main__":
    c_in, c_out, kernel_size, stride = 4, 4, 2, 2
    c_hidden = c_out * 4
    N, D, H, W = 2, 8, 8, 8

    key = jax.random.PRNGKey(0)
    ks = jax.random.split(key, 12)

    # Deterministic synthetic parameters (shapes from the module's __init__).
    # GDN params kept positive (reparameterized GDN params are positive).
    params = {
        "gdn_beta": jnp.ones((c_in,), jnp.float32),
        "gdn_gamma": (0.1 * jnp.eye(c_in, dtype=jnp.float32)
                      + 0.01 * jax.random.uniform(ks[0], (c_in, c_in), jnp.float32)),
        "conv1_w": 0.1 * jax.random.normal(
            ks[1], (c_out, c_in, kernel_size, kernel_size, kernel_size), jnp.float32),
        "conv1_b": 0.1 * jax.random.normal(ks[2], (c_out,), jnp.float32),
        "conv2_w": 0.1 * jax.random.normal(ks[3], (c_hidden, c_out, 1, 1, 1), jnp.float32),
        "conv2_b": 0.1 * jax.random.normal(ks[4], (c_hidden,), jnp.float32),
        "conv3_w": 0.1 * jax.random.normal(ks[5], (c_out, c_hidden, 1, 1, 1), jnp.float32),
        "conv3_b": 0.1 * jax.random.normal(ks[6], (c_out,), jnp.float32),
        "shortcut_w": 0.1 * jax.random.normal(ks[7], (c_out, c_in, 1, 1, 1), jnp.float32),
        "shortcut_b": 0.1 * jax.random.normal(ks[8], (c_out,), jnp.float32),
    }

    x = jax.random.normal(ks[9], (N, c_in, D, H, W), jnp.float32)

    out = downsampling_resblock3d(x, params, kernel_size, stride)
    out = jax.block_until_ready(out)

    ref = jax.block_until_ready(ref_forward(x, params, kernel_size, stride))
    assert out.shape == ref.shape, (out.shape, ref.shape)
    np.testing.assert_allclose(np.asarray(out), np.asarray(ref), rtol=1e-4, atol=1e-4)

    print("KERNEL_OK")
</pallas_src>

<mosaic_0001>
module attributes {stable_mosaic.version = 11 : i64} {
  func.func @kernel(%arg0: i32, %arg1: i32, %arg2: memref<1x32x128xf32, #tpu.memory_space<vmem>>, %arg3: memref<32x32xf32, #tpu.memory_space<vmem>>, %arg4: memref<32x1xf32, #tpu.memory_space<vmem>>, %arg5: memref<8x32xf32, #tpu.memory_space<vmem>>, %arg6: memref<8x1xf32, #tpu.memory_space<vmem>>, %arg7: memref<16x8xf32, #tpu.memory_space<vmem>>, %arg8: memref<16x1xf32, #tpu.memory_space<vmem>>, %arg9: memref<8x16xf32, #tpu.memory_space<vmem>>, %arg10: memref<4x1xf32, #tpu.memory_space<vmem>>, %arg11: memref<1x4x128xf32, #tpu.memory_space<vmem>>) attributes {dimension_semantics = [#tpu.dimension_semantics<parallel>, #tpu.dimension_semantics<parallel>], iteration_bounds = array<i64: 2, 1>, scalar_prefetch = 0 : i64, scratch_operands = 0 : i64, tpu.core_type = #tpu.core_type<tc>, window_params = [{transform_indices = @transform_0, window_bounds = array<i64: 1, 32, 128>}, {pipeline_mode = #tpu.pipeline_mode<synchronous>, transform_indices = @transform_1, window_bounds = array<i64: 32, 32>}, {pipeline_mode = #tpu.pipeline_mode<synchronous>, transform_indices = @transform_2, window_bounds = array<i64: 32, 1>}, {pipeline_mode = #tpu.pipeline_mode<synchronous>, transform_indices = @transform_3, window_bounds = array<i64: 8, 32>}, {pipeline_mode = #tpu.pipeline_mode<synchronous>, transform_indices = @transform_4, window_bounds = array<i64: 8, 1>}, {pipeline_mode = #tpu.pipeline_mode<synchronous>, transform_indices = @transform_5, window_bounds = array<i64: 16, 8>}, {pipeline_mode = #tpu.pipeline_mode<synchronous>, transform_indices = @transform_6, window_bounds = array<i64: 16, 1>}, {pipeline_mode = #tpu.pipeline_mode<synchronous>, transform_indices = @transform_7, window_bounds = array<i64: 8, 16>}, {pipeline_mode = #tpu.pipeline_mode<synchronous>, transform_indices = @transform_8, window_bounds = array<i64: 4, 1>}, {transform_indices = @transform_9, window_bounds = array<i64: 1, 4, 128>}]} {
    %c0 = arith.constant 0 : index
    %c0_0 = arith.constant 0 : index
    %c0_1 = arith.constant 0 : index
    %0 = vector.load %arg2[%c0, %c0_0, %c0_1] : memref<1x32x128xf32, #tpu.memory_space<vmem>>, vector<1x32x128xf32>
    %1 = vector.shape_cast %0 : vector<1x32x128xf32> to vector<32x128xf32>
    %c0_2 = arith.constant 0 : index
    %c0_3 = arith.constant 0 : index
    %2 = vector.load %arg3[%c0_2, %c0_3] : memref<32x32xf32, #tpu.memory_space<vmem>>, vector<32x32xf32>
    %3 = arith.mulf %1, %1 : vector<32x128xf32>
    %cst = arith.constant dense<0.000000e+00> : vector<32x128xf32>
    %4 = tpu.matmul %2, %3, %cst {dimension_numbers = #tpu.dot_dimension_numbers<[1], [0], [0], [1], [0, 0, 1, 1], [], []>, precision = #tpu.contract_precision<fp32>} : vector<32x32xf32>, vector<32x128xf32>, vector<32x128xf32> -> vector<32x128xf32>
    %c0_4 = arith.constant 0 : index
    %c0_5 = arith.constant 0 : index
    %5 = vector.load %arg4[%c0_4, %c0_5] : memref<32x1xf32, #tpu.memory_space<vmem>>, vector<32x1xf32>
    %6 = vector.broadcast %5 : vector<32x1xf32> to vector<32x128xf32>
    %7 = arith.addf %4, %6 : vector<32x128xf32>
    %cst_6 = arith.constant 9.99999968E-21 : f32
    %8 = vector.broadcast %cst_6 : f32 to vector<32x128xf32>
    %9 = arith.maximumf %7, %8 : vector<32x128xf32>
    %10 = math.rsqrt %9 : vector<32x128xf32>
    %11 = arith.mulf %1, %10 : vector<32x128xf32>
    %c0_7 = arith.constant 0 : index
    %c0_8 = arith.constant 0 : index
    %12 = vector.load %arg5[%c0_7, %c0_8] : memref<8x32xf32, #tpu.memory_space<vmem>>, vector<8x32xf32>
    %cst_9 = arith.constant dense<0.000000e+00> : vector<8x128xf32>
    %13 = tpu.matmul %12, %11, %cst_9 {dimension_numbers = #tpu.dot_dimension_numbers<[1], [0], [0], [1], [0, 0, 1, 1], [], []>, precision = #tpu.contract_precision<fp32>} : vector<8x32xf32>, vector<32x128xf32>, vector<8x128xf32> -> vector<8x128xf32>
    %c0_10 = arith.constant 0 : index
    %c0_11 = arith.constant 0 : index
    %14 = vector.load %arg6[%c0_10, %c0_11] : memref<8x1xf32, #tpu.memory_space<vmem>>, vector<8x1xf32>
    %15 = vector.broadcast %14 : vector<8x1xf32> to vector<8x128xf32>
    %16 = arith.addf %13, %15 : vector<8x128xf32>
    %c0_12 = arith.constant 0 : index
    %c0_13 = arith.constant 0 : index
    %17 = vector.load %arg7[%c0_12, %c0_13] : memref<16x8xf32, #tpu.memory_space<vmem>>, vector<16x8xf32>
    %cst_14 = arith.constant dense<0.000000e+00> : vector<16x128xf32>
    %18 = tpu.matmul %17, %16, %cst_14 {dimension_numbers = #tpu.dot_dimension_numbers<[1], [0], [0], [1], [0, 0, 1, 1], [], []>, precision = #tpu.contract_precision<fp32>} : vector<16x8xf32>, vector<8x128xf32>, vector<16x128xf32> -> vector<16x128xf32>
    %c0_15 = arith.constant 0 : index
    %c0_16 = arith.constant 0 : index
    %19 = vector.load %arg8[%c0_15, %c0_16] : memref<16x1xf32, #tpu.memory_space<vmem>>, vector<16x1xf32>
    %20 = vector.broadcast %19 : vector<16x1xf32> to vector<16x128xf32>
    %21 = arith.addf %18, %20 : vector<16x128xf32>
    %cst_17 = arith.constant 5.000000e-01 : f32
    %22 = vector.broadcast %cst_17 : f32 to vector<16x128xf32>
    %23 = arith.mulf %22, %21 : vector<16x128xf32>
    %cst_18 = arith.constant 0.707106769 : f32
    %24 = vector.broadcast %cst_18 : f32 to vector<16x128xf32>
    %25 = arith.mulf %21, %24 : vector<16x128xf32>
    %26 = math.erf %25 : vector<16x128xf32>
    %cst_19 = arith.constant 1.000000e+00 : f32
    %27 = vector.broadcast %cst_19 : f32 to vector<16x128xf32>
    %28 = arith.addf %27, %26 : vector<16x128xf32>
    %29 = arith.mulf %23, %28 : vector<16x128xf32>
    %c0_20 = arith.constant 0 : index
    %c0_21 = arith.constant 0 : index
    %30 = vector.load %arg9[%c0_20, %c0_21] : memref<8x16xf32, #tpu.memory_space<vmem>>, vector<8x16xf32>
    %cst_22 = arith.constant dense<0.000000e+00> : vector<8x128xf32>
    %31 = tpu.matmul %30, %29, %cst_22 {dimension_numbers = #tpu.dot_dimension_numbers<[1], [0], [0], [1], [0, 0, 1, 1], [], []>, precision = #tpu.contract_precision<fp32>} : vector<8x16xf32>, vector<16x128xf32>, vector<8x128xf32> -> vector<8x128xf32>
    %32 = vector.extract_strided_slice %31 {offsets = [0, 0], sizes = [4, 128], strides = [1, 1]} : vector<8x128xf32> to vector<4x128xf32>
    %c0_23 = arith.constant 0 : index
    %c0_24 = arith.constant 0 : index
    %33 = vector.load %arg10[%c0_23, %c0_24] : memref<4x1xf32, #tpu.memory_space<vmem>>, vector<4x1xf32>
    %34 = vector.broadcast %33 : vector<4x1xf32> to vector<4x128xf32>
    %35 = arith.addf %32, %34 : vector<4x128xf32>
    %36 = vector.extract_strided_slice %16 {offsets = [4, 0], sizes = [4, 128], strides = [1, 1]} : vector<8x128xf32> to vector<4x128xf32>
    %37 = arith.addf %35, %36 : vector<4x128xf32>
    %c0_25 = arith.constant 0 : index
    %c0_26 = arith.constant 0 : index
    %c0_27 = arith.constant 0 : index
    %38 = vector.load %arg11[%c0_25, %c0_26, %c0_27] : memref<1x4x128xf32, #tpu.memory_space<vmem>>, vector<1x4x128xf32>
    %39 = vector.shape_cast %38 : vector<1x4x128xf32> to vector<4x128xf32>
    %40 = vector.shape_cast %37 : vector<4x128xf32> to vector<1x4x128xf32>
    tpu.vector_store %arg11[%c0_25, %c0_26, %c0_27], %40 {strides = array<i32>} : memref<1x4x128xf32, #tpu.memory_space<vmem>>, vector<1x4x128xf32>,
    return
  }
  func.func @transform_0(%arg0: i32, %arg1: i32) -> (i32, i32, i32) {
    %c0_i32 = arith.constant 0 : i32
    %c0_i32_0 = arith.constant 0 : i32
    return %arg0, %c0_i32, %arg1 : i32, i32, i32
  }
  func.func @transform_1(%arg0: i32, %arg1: i32) -> (i32, i32) {
    %c0_i32 = arith.constant 0 : i32
    %c0_i32_0 = arith.constant 0 : i32
    %c0_i32_1 = arith.constant 0 : i32
    return %c0_i32, %c0_i32_0 : i32, i32
  }
  func.func @transform_2(%arg0: i32, %arg1: i32) -> (i32, i32) {
    %c0_i32 = arith.constant 0 : i32
    %c0_i32_0 = arith.constant 0 : i32
    %c0_i32_1 = arith.constant 0 : i32
    return %c0_i32, %c0_i32_0 : i32, i32
  }
  func.func @transform_3(%arg0: i32, %arg1: i32) -> (i32, i32) {
    %c0_i32 = arith.constant 0 : i32
    %c0_i32_0 = arith.constant 0 : i32
    %c0_i32_1 = arith.constant 0 : i32
    return %c0_i32, %c0_i32_0 : i32, i32
  }
  func.func @transform_4(%arg0: i32, %arg1: i32) -> (i32, i32) {
    %c0_i32 = arith.constant 0 : i32
    %c0_i32_0 = arith.constant 0 : i32
    %c0_i32_1 = arith.constant 0 : i32
    return %c0_i32, %c0_i32_0 : i32, i32
  }
  func.func @transform_5(%arg0: i32, %arg1: i32) -> (i32, i32) {
    %c0_i32 = arith.constant 0 : i32
    %c0_i32_0 = arith.constant 0 : i32
    %c0_i32_1 = arith.constant 0 : i32
    return %c0_i32, %c0_i32_0 : i32, i32
  }
  func.func @transform_6(%arg0: i32, %arg1: i32) -> (i32, i32) {
    %c0_i32 = arith.constant 0 : i32
    %c0_i32_0 = arith.constant 0 : i32
    %c0_i32_1 = arith.constant 0 : i32
    return %c0_i32, %c0_i32_0 : i32, i32
  }
  func.func @transform_7(%arg0: i32, %arg1: i32) -> (i32, i32) {
    %c0_i32 = arith.constant 0 : i32
    %c0_i32_0 = arith.constant 0 : i32
    %c0_i32_1 = arith.constant 0 : i32
    return %c0_i32, %c0_i32_0 : i32, i32
  }
  func.func @transform_8(%arg0: i32, %arg1: i32) -> (i32, i32) {
    %c0_i32 = arith.constant 0 : i32
    %c0_i32_0 = arith.constant 0 : i32
    %c0_i32_1 = arith.constant 0 : i32
    return %c0_i32, %c0_i32_0 : i32, i32
  }
  func.func @transform_9(%arg0: i32, %arg1: i32) -> (i32, i32, i32) {
    %c0_i32 = arith.constant 0 : i32
    %c0_i32_0 = arith.constant 0 : i32
    return %arg0, %c0_i32, %arg1 : i32, i32, i32
  }
}

</mosaic_0001>

<llo_original>
// kernel: tile.8
$region0: #{tile.8}
  #allocation0 [shape = 's32[1]{0}', space=sflag, size = 0x4, scoped, tag = 'scoped memory for tile.8']
  %s0 = inlined_call_operand.vmem [shape: f32[4], index: 0, kind: input, shape index: {}]
  %s1 = inlined_call_operand.vmem [shape: f32[8,4], index: 1, kind: output, shape index: {}]
  // Predicated region
  $region2: #{tile.8} parent=0 // pred_check
    _
  $region3: #{tile.8} parent=0 // pred_check_branch
    %3 = sbr.rel (0) target = $region5
  $region4: #{tile.8} parent=0 // pred_region
    _
  $region5: #{tile.8} parent=0 // pred_fallthru
    _
  %v4 = vld [vmem:[%s0] ss:$0 sm:$0xff]
  %5 = vst [vmem:[%s1] sm:$0xff] %v4

// kernel: tile.0
$region0: #{tile.0}
  %s0 = inlined_call_operand.vmem [shape: f32[8,4], index: 0, kind: input, shape index: {}]
  %s1 = inlined_call_operand.vmem [shape: f32[32,1], index: 1, kind: output, shape index: {}]
  %v2 = vld [vmem:[%s0] sm:$0xff]
  %vm3 = vcmask 7168
  %4 = vst.msk [vmem:[%s1] ss:$4 sm:$0xff] %vm3, %v2
  %v5 = vld [vmem:[%s0] sm:$0xff]
  %6 = vrot.lane.b32.xlu0 %v5, 127
  %v7 = vpop.permute.xlu0 %6
  %vm8 = vcmask 7168
  %s9 = scalar_lea.vmem %s1, 1
  %10 = vst.msk [vmem:[%s9] ss:$4 sm:$0xff] %vm8, %v7
  %v11 = vld [vmem:[%s0] sm:$0xff]
  %12 = vrot.lane.b32.xlu0 %v11, 126
  %v13 = vpop.permute.xlu0 %12
  %vm14 = vcmask 7168
  %s15 = scalar_lea.vmem %s1, 2
  %16 = vst.msk [vmem:[%s15] ss:$4 sm:$0xff] %vm14, %v13
  %v17 = vld [vmem:[%s0] sm:$0xff]
  %18 = vrot.lane.b32.xlu0 %v17, 125
  %v19 = vpop.permute.xlu0 %18
  %vm20 = vcmask 7168
  %s21 = scalar_lea.vmem %s1, 3
  %22 = vst.msk [vmem:[%s21] ss:$4 sm:$0xff] %vm20, %v19

// kernel: downsampling_resblock3d.1
$region0: #{downsampling_resblock3d.1}
  #allocation0 [shape = 'u32[]', space=smem, size = 0x4, offset = 0x4, fixed_abs, tag = 'smem constant byte address 0x4 - core index']
  #allocation1 [shape = 'u32[144,128]{1,0:T(1,128)}', space=vmem, size = 0x12000, scoped, tag = 'internal scratch']
  %s0 = inlined_call_operand.vmem [shape: f32[2,32,128], index: 0, kind: input, shape index: {}]
  %s1 = inlined_call_operand.vmem [shape: f32[32,32], index: 1, kind: input, shape index: {}]
  %s2 = inlined_call_operand.vmem [shape: f32[32,1], index: 2, kind: input, shape index: {}]
  %s3 = inlined_call_operand.vmem [shape: f32[8,32], index: 3, kind: input, shape index: {}]
  %s4 = inlined_call_operand.vmem [shape: f32[8,1], index: 4, kind: input, shape index: {}]
  %s5 = inlined_call_operand.vmem [shape: f32[16,8], index: 5, kind: input, shape index: {}]
  %s6 = inlined_call_operand.vmem [shape: f32[16,1], index: 6, kind: input, shape index: {}]
  %s7 = inlined_call_operand.vmem [shape: f32[8,16], index: 7, kind: input, shape index: {}]
  %s8 = inlined_call_operand.vmem [shape: f32[4,1], index: 8, kind: input, shape index: {}]
  %s9 = inlined_call_operand.vmem [shape: f32[2,4,128], index: 9, kind: output, shape index: {}]
  %s10 = sld [smem:[#allocation0]]
  $region69: #{downsampling_resblock3d.1} parent=0
    _
  %s12 = ssub.s32 1, %s10
  %s13 = scalar_select 0, %s12, %s10
  loop: start=0, step=1, limit=4
  $region2: #{downsampling_resblock3d.1} parent=0 // loop_pre_header
    _
  $region3: #{downsampling_resblock3d.1} parent=0 // loop_header
    %s15 = sphi 0, %s19
    %p16 = scmp.ge.s32.totalorder %s15, 4
    %s22 = sphi 0, %s34
    %s23 = sphi 0, %s30
    %s24 = sphi 0, %s22
    %s25 = sphi 0, %s23
    %s26 = sphi 0, %s24
    %s27 = sphi 0, %s25
    %s39 = sphi 0, %s41
    %s42 = sphi 0, %s39
    %s43 = sphi 0, %s42
    %s59 = sphi 0, %s43
    %s63 = sphi 0, %s63
    %s65 = sphi 0, %s63
    %s66 = sphi 0, %s65
    %s80 = sphi 0, %s66
    %s84 = sphi 0, %s84
    %s86 = sphi 0, %s84
    %s87 = sphi 0, %s86
    %s101 = sphi 0, %s87
    %s105 = sphi 0, %s105
    %s107 = sphi 0, %s105
    %s108 = sphi 0, %s107
    %s122 = sphi 0, %s108
    %s126 = sphi 0, %s126
    %s128 = sphi 0, %s126
    %s129 = sphi 0, %s128
    %s143 = sphi 0, %s129
    %s147 = sphi 0, %s147
    %s149 = sphi 0, %s147
    %s150 = sphi 0, %s149
    %s164 = sphi 0, %s150
    %s168 = sphi 0, %s168
    %s170 = sphi 0, %s168
    %s171 = sphi 0, %s170
    %s185 = sphi 0, %s171
    %s189 = sphi 0, %s189
    %s191 = sphi 0, %s189
    %s192 = sphi 0, %s191
    %s206 = sphi 0, %s192
    %s210 = sphi 0, %s210
    %s212 = sphi 0, %s210
    %s213 = sphi 0, %s212
    %s227 = sphi 0, %s213
    %s235 = sphi 0, %s237
    %s238 = sphi 0, %s235
    %s239 = sphi 0, %s238
    %s255 = sphi 0, %s239
  $region4: #{downsampling_resblock3d.1} parent=0 // loop_header_branch
    %18 = sbr.rel (%p16) target = $region8
  $region5: #{downsampling_resblock3d.1} parent=0 // loop_body
    %s20 = ssub.s32 %s15, 1
    %s21 = ssub.s32 %s15, 2
    %s28 = sadd.s32 1, %s23
    %p29 = scmp.ge.s32.totalorder %s28, 1
    %s30 = scalar_select %p29, 0, %s28
    %s31 = sadd.s32 1, %s22
    %s32 = scalar_select %p29, %s31, %s22
    %p33 = scmp.ge.s32.totalorder %s32, 2
    %s34 = scalar_select %p33, 0, %s32
    %s35 = ssub.s32 %s22, %s34
    %s36 = ssub.s32 %s23, %s30
    %s37 = sor.u32 %s35, %s36
    %p38 = scmp.eq.s32.totalorder %s37, 0
    %s40 = sadd.s32 %s39, 1
    %s41 = scalar_select %p38, %s39, %s40
    %p44 = pneg %p38
    %p45 = scmp.eq.s32.totalorder %s15, 1
    %p46 = por %p44, %p45
    %p47 = scmp.ne.s32.totalorder %s39, %s42
    %p48 = scmp.eq.s32.totalorder %s15, 0
    %p49 = por %p47, %p48
    %p50 = scmp.ne.s32.totalorder %s39, %s42
    %p51 = scmp.eq.s32.totalorder %s20, 1
    %p52 = por %p50, %p51
    %p53 = scmp.ne.s32.totalorder %s42, %s43
    %p54 = scmp.eq.s32.totalorder %s20, 0
    %p55 = por %p53, %p54
    %p56 = scmp.ne.s32.totalorder %s42, %s43
    %p57 = scmp.eq.s32.totalorder %s21, 1
    %p58 = por %p56, %p57
    %p60 = scmp.ne.s32.totalorder %s43, %s59
    %p61 = scmp.eq.s32.totalorder %s21, 0
    %p62 = por %p60, %p61
    %s64 = sadd.s32 %s63, 1
    %p67 = scmp.eq.s32.totalorder %s15, 1
    %p68 = scmp.ne.s32.totalorder %s63, %s65
    %p69 = scmp.eq.s32.totalorder %s15, 0
    %p70 = por %p68, %p69
    %p71 = scmp.ne.s32.totalorder %s63, %s65
    %p72 = scmp.eq.s32.totalorder %s20, 1
    %p73 = por %p71, %p72
    %p74 = scmp.ne.s32.totalorder %s65, %s66
    %p75 = scmp.eq.s32.totalorder %s20, 0
    %p76 = por %p74, %p75
    %p77 = scmp.ne.s32.totalorder %s65, %s66
    %p78 = scmp.eq.s32.totalorder %s21, 1
    %p79 = por %p77, %p78
    %p81 = scmp.ne.s32.totalorder %s66, %s80
    %p82 = scmp.eq.s32.totalorder %s21, 0
    %p83 = por %p81, %p82
    %s85 = sadd.s32 %s84, 1
    %p88 = scmp.eq.s32.totalorder %s15, 1
    %p89 = scmp.ne.s32.totalorder %s84, %s86
    %p90 = scmp.eq.s32.totalorder %s15, 0
    %p91 = por %p89, %p90
    %p92 = scmp.ne.s32.totalorder %s84, %s86
    %p93 = scmp.eq.s32.totalorder %s20, 1
    %p94 = por %p92, %p93
    %p95 = scmp.ne.s32.totalorder %s86, %s87
    %p96 = scmp.eq.s32.totalorder %s20, 0
    %p97 = por %p95, %p96
    %p98 = scmp.ne.s32.totalorder %s86, %s87
    %p99 = scmp.eq.s32.totalorder %s21, 1
    %p100 = por %p98, %p99
    %p102 = scmp.ne.s32.totalorder %s87, %s101
    %p103 = scmp.eq.s32.totalorder %s21, 0
    %p104 = por %p102, %p103
    %s106 = sadd.s32 %s105, 1
    %p109 = scmp.eq.s32.totalorder %s15, 1
    %p110 = scmp.ne.s32.totalorder %s105, %s107
    %p111 = scmp.eq.s32.totalorder %s15, 0
    %p112 = por %p110, %p111
    %p113 = scmp.ne.s32.totalorder %s105, %s107
    %p114 = scmp.eq.s32.totalorder %s20, 1
    %p115 = por %p113, %p114
    %p116 = scmp.ne.s32.totalorder %s107, %s108
    %p117 = scmp.eq.s32.totalorder %s20, 0
    %p118 = por %p116, %p117
    %p119 = scmp.ne.s32.totalorder %s107, %s108
    %p120 = scmp.eq.s32.totalorder %s21, 1
    %p121 = por %p119, %p120
    %p123 = scmp.ne.s32.totalorder %s108, %s122
    %p124 = scmp.eq.s32.totalorder %s21, 0
    %p125 = por %p123, %p124
    %s127 = sadd.s32 %s126, 1
    %p130 = scmp.eq.s32.totalorder %s15, 1
    %p131 = scmp.ne.s32.totalorder %s126, %s128
    %p132 = scmp.eq.s32.totalorder %s15, 0
    %p133 = por %p131, %p132
    %p134 = scmp.ne.s32.totalorder %s126, %s128
    %p135 = scmp.eq.s32.totalorder %s20, 1
    %p136 = por %p134, %p135
    %p137 = scmp.ne.s32.totalorder %s128, %s129
    %p138 = scmp.eq.s32.totalorder %s20, 0
    %p139 = por %p137, %p138
    %p140 = scmp.ne.s32.totalorder %s128, %s129
    %p141 = scmp.eq.s32.totalorder %s21, 1
    %p142 = por %p140, %p141
    %p144 = scmp.ne.s32.totalorder %s129, %s143
    %p145 = scmp.eq.s32.totalorder %s21, 0
    %p146 = por %p144, %p145
    %s148 = sadd.s32 %s147, 1
    %p151 = scmp.eq.s32.totalorder %s15, 1
    %p152 = scmp.ne.s32.totalorder %s147, %s149
    %p153 = scmp.eq.s32.totalorder %s15, 0
    %p154 = por %p152, %p153
    %p155 = scmp.ne.s32.totalorder %s147, %s149
    %p156 = scmp.eq.s32.totalorder %s20, 1
    %p157 = por %p155, %p156
    %p158 = scmp.ne.s32.totalorder %s149, %s150
    %p159 = scmp.eq.s32.totalorder %s20, 0
    %p160 = por %p158, %p159
    %p161 = scmp.ne.s32.totalorder %s149, %s150
    %p162 = scmp.eq.s32.totalorder %s21, 1
    %p163 = por %p161, %p162
    %p165 = scmp.ne.s32.totalorder %s150, %s164
    %p166 = scmp.eq.s32.totalorder %s21, 0
    %p167 = por %p165, %p166
    %s169 = sadd.s32 %s168, 1
    %p172 = scmp.eq.s32.totalorder %s15, 1
    %p173 = scmp.ne.s32.totalorder %s168, %s170
    %p174 = scmp.eq.s32.totalorder %s15, 0
    %p175 = por %p173, %p174
    %p176 = scmp.ne.s32.totalorder %s168, %s170
    %p177 = scmp.eq.s32.totalorder %s20, 1
    %p178 = por %p176, %p177
    %p179 = scmp.ne.s32.totalorder %s170, %s171
    %p180 = scmp.eq.s32.totalorder %s20, 0
    %p181 = por %p179, %p180
    %p182 = scmp.ne.s32.totalorder %s170, %s171
    %p183 = scmp.eq.s32.totalorder %s21, 1
    %p184 = por %p182, %p183
    %p186 = scmp.ne.s32.totalorder %s171, %s185
    %p187 = scmp.eq.s32.totalorder %s21, 0
    %p188 = por %p186, %p187
    %s190 = sadd.s32 %s189, 1
    %p193 = scmp.eq.s32.totalorder %s15, 1
    %p194 = scmp.ne.s32.totalorder %s189, %s191
    %p195 = scmp.eq.s32.totalorder %s15, 0
    %p196 = por %p194, %p195
    %p197 = scmp.ne.s32.totalorder %s189, %s191
    %p198 = scmp.eq.s32.totalorder %s20, 1
    %p199 = por %p197, %p198
    %p200 = scmp.ne.s32.totalorder %s191, %s192
    %p201 = scmp.eq.s32.totalorder %s20, 0
    %p202 = por %p200, %p201
    %p203 = scmp.ne.s32.totalorder %s191, %s192
    %p204 = scmp.eq.s32.totalorder %s21, 1
    %p205 = por %p203, %p204
    %p207 = scmp.ne.s32.totalorder %s192, %s206
    %p208 = scmp.eq.s32.totalorder %s21, 0
    %p209 = por %p207, %p208
    %s211 = sadd.s32 %s210, 1
    %p214 = scmp.eq.s32.totalorder %s15, 1
    %p215 = scmp.ne.s32.totalorder %s210, %s212
    %p216 = scmp.eq.s32.totalorder %s15, 0
    %p217 = por %p215, %p216
    %p218 = scmp.ne.s32.totalorder %s210, %s212
    %p219 = scmp.eq.s32.totalorder %s20, 1
    %p220 = por %p218, %p219
    %p221 = scmp.ne.s32.totalorder %s212, %s213
    %p222 = scmp.eq.s32.totalorder %s20, 0
    %p223 = por %p221, %p222
    %p224 = scmp.ne.s32.totalorder %s212, %s213
    %p225 = scmp.eq.s32.totalorder %s21, 1
    %p226 = por %p224, %p225
    %p228 = scmp.ne.s32.totalorder %s213, %s227
    %p229 = scmp.eq.s32.totalorder %s21, 0
    %p230 = por %p228, %p229
    %s231 = ssub.s32 %s22, %s34
    %s232 = ssub.s32 %s23, %s30
    %s233 = sor.u32 %s231, %s232
    %p234 = scmp.eq.s32.totalorder %s233, 0
    %s236 = sadd.s32 %s235, 1
    %s237 = scalar_select %p234, %s235, %s236
    %p240 = pneg %p234
    %p241 = scmp.eq.s32.totalorder %s15, 1
    %p242 = por %p240, %p241
    %p243 = scmp.ne.s32.totalorder %s235, %s238
    %p244 = scmp.eq.s32.totalorder %s15, 0
    %p245 = por %p243, %p244
    %p246 = scmp.ne.s32.totalorder %s235, %s238
    %p247 = scmp.eq.s32.totalorder %s20, 1
    %p248 = por %p246, %p247
    %p249 = scmp.ne.s32.totalorder %s238, %s239
    %p250 = scmp.eq.s32.totalorder %s20, 0
    %p251 = por %p249, %p250
    %p252 = scmp.ne.s32.totalorder %s238, %s239
    %p253 = scmp.eq.s32.totalorder %s21, 1
    %p254 = por %p252, %p253
    %p256 = scmp.ne.s32.totalorder %s239, %s255
    %p257 = scmp.eq.s32.totalorder %s21, 0
    %p258 = por %p256, %p257
    %p259 = scmp.le.s32.totalorder 1, %s15
    %p260 = scmp.lt.s32.totalorder %s15, 3
    %p261 = pnand %p259, %p260
    %p262 = pneg %p261
    // Predicated region
    $region9: #{downsampling_resblock3d.1} parent=5 // pred_check
      _
    $region10: #{downsampling_resblock3d.1} parent=5 // pred_check_branch
      %264 = sbr.rel (%p261) target = $region12
    $region11: #{downsampling_resblock3d.1} parent=5 // pred_region
      %s265 = ssub.s32 %s15, 1
      // Predicated region
      $region13: #{downsampling_resblock3d.1} parent=11 // pred_check
        %p266 = pneg %p76
      $region14: #{downsampling_resblock3d.1} parent=11 // pred_check_branch
        %268 = sbr.rel (%p266) target = $region16
      $region15: #{downsampling_resblock3d.1} parent=11 // pred_region
        _
      $region16: #{downsampling_resblock3d.1} parent=11 // pred_fallthru
        _
      // Predicated region
      $region17: #{downsampling_resblock3d.1} parent=11 // pred_check
        %p269 = pneg %p97
      $region18: #{downsampling_resblock3d.1} parent=11 // pred_check_branch
        %271 = sbr.rel (%p269) target = $region20
      $region19: #{downsampling_resblock3d.1} parent=11 // pred_region
        _
      $region20: #{downsampling_resblock3d.1} parent=11 // pred_fallthru
        _
      // Predicated region
      $region21: #{downsampling_resblock3d.1} parent=11 // pred_check
        %p272 = pneg %p118
      $region22: #{downsampling_resblock3d.1} parent=11 // pred_check_branch
        %274 = sbr.rel (%p272) target = $region24
      $region23: #{downsampling_resblock3d.1} parent=11 // pred_region
        _
      $region24: #{downsampling_resblock3d.1} parent=11 // pred_fallthru
        _
      // Predicated region
      $region25: #{downsampling_resblock3d.1} parent=11 // pred_check
        %p275 = pneg %p139
      $region26: #{downsampling_resblock3d.1} parent=11 // pred_check_branch
        %277 = sbr.rel (%p275) target = $region28
      $region27: #{downsampling_resblock3d.1} parent=11 // pred_region
        _
      $region28: #{downsampling_resblock3d.1} parent=11 // pred_fallthru
        _
      // Predicated region
      $region29: #{downsampling_resblock3d.1} parent=11 // pred_check
        %p278 = pneg %p160
      $region30: #{downsampling_resblock3d.1} parent=11 // pred_check_branch
        %280 = sbr.rel (%p278) target = $region32
      $region31: #{downsampling_resblock3d.1} parent=11 // pred_region
        _
      $region32: #{downsampling_resblock3d.1} parent=11 // pred_fallthru
        _
      // Predicated region
      $region33: #{downsampling_resblock3d.1} parent=11 // pred_check
        %p281 = pneg %p181
      $region34: #{downsampling_resblock3d.1} parent=11 // pred_check_branch
        %283 = sbr.rel (%p281) target = $region36
      $region35: #{downsampling_resblock3d.1} parent=11 // pred_region
        _
      $region36: #{downsampling_resblock3d.1} parent=11 // pred_fallthru
        _
      // Predicated region
      $region37: #{downsampling_resblock3d.1} parent=11 // pred_check
        %p284 = pneg %p202
      $region38: #{downsampling_resblock3d.1} parent=11 // pred_check_branch
        %286 = sbr.rel (%p284) target = $region40
      $region39: #{downsampling_resblock3d.1} parent=11 // pred_region
        _
      $region40: #{downsampling_resblock3d.1} parent=11 // pred_fallthru
        _
      // Predicated region
      $region41: #{downsampling_resblock3d.1} parent=11 // pred_check
        %p287 = pneg %p223
      $region42: #{downsampling_resblock3d.1} parent=11 // pred_check_branch
        %289 = sbr.rel (%p287) target = $region44
      $region43: #{downsampling_resblock3d.1} parent=11 // pred_region
        _
      $region44: #{downsampling_resblock3d.1} parent=11 // pred_fallthru
        _
    $region12: #{downsampling_resblock3d.1} parent=5 // pred_fallthru
      _
    %p290 = scmp.lt.s32.totalorder %s15, 2
    // Predicated region
    $region45: #{downsampling_resblock3d.1} parent=5 // pred_check
      %p291 = pneg %p290
    $region46: #{downsampling_resblock3d.1} parent=5 // pred_check_branch
      %293 = sbr.rel (%p291) target = $region48
    $region47: #{downsampling_resblock3d.1} parent=5 // pred_region
      // Predicated region
      $region49: #{downsampling_resblock3d.1} parent=47 // pred_check
        %p294 = pneg %p49
      $region50: #{downsampling_resblock3d.1} parent=47 // pred_check_branch
        %296 = sbr.rel (%p294) target = $region52
      $region51: #{downsampling_resblock3d.1} parent=47 // pred_region
        %p297 = scmp.lt.s32.totalorder %s22, 1
        %s298 = scalar_select %p297, %s22, 1
        %p299 = scmp.lt.s32.totalorder %s23, 0
        %s300 = scalar_select %p299, %s23, 0
        %s301 = smul.addr %s298, 4
        %s302 = sadd.s32 %s300, %s301
        %s303 = smul.addr %s302, 8
        %s304 = scalar_lea.vmem %s0, %s303
      $region52: #{downsampling_resblock3d.1} parent=47 // pred_fallthru
        _
    $region48: #{downsampling_resblock3d.1} parent=5 // pred_fallthru
      _
    %p305 = scmp.le.s32.totalorder 1, %s15
    %p306 = scmp.lt.s32.totalorder %s15, 3
    %p307 = pnand %p305, %p306
    %p308 = pneg %p307
    // Predicated region
    $region53: #{downsampling_resblock3d.1} parent=5 // pred_check
      _
    $region54: #{downsampling_resblock3d.1} parent=5 // pred_check_branch
      %310 = sbr.rel (%p307) target = $region56
    $region55: #{downsampling_resblock3d.1} parent=5 // pred_region
      %s311 = ssub.s32 %s15, 1
      %p312 = scmp.lt.s32.totalorder %s24, 1
      %s313 = scalar_select %p312, %s24, 1
      %p314 = scmp.lt.s32.totalorder %s25, 0
      %s315 = scalar_select %p314, %s25, 0
      %s316 = smul.addr %s313, 4
      %s317 = sadd.s32 %s315, %s316
      %s318 = smul.addr %s317, 8
      %s319 = scalar_lea.vmem %s0, %s318
      %p320 = pneg %p55
      %p321 = pneg %p52
      %p322 = pneg %p76
      %p323 = pneg %p73
      %p324 = pneg %p97
      %p325 = pneg %p94
      %p326 = pneg %p118
      %p327 = pneg %p115
      %p328 = pneg %p139
      %p329 = pneg %p136
      %p330 = pneg %p160
      %p331 = pneg %p157
      %p332 = pneg %p181
      %p333 = pneg %p178
      %p334 = pneg %p202
      %p335 = pneg %p199
      %p336 = pneg %p223
      %p337 = pneg %p220
      %p338 = pneg %p251
      %p339 = pneg %p248
      %p340 = scmp.lt.s32.totalorder %s24, 1
      %s341 = scalar_select %p340, %s24, 1
      %p342 = scmp.lt.s32.totalorder %s25, 0
      %s343 = scalar_select %p342, %s25, 0
      %s344 = sadd.s32 %s343, %s341
      %s345 = smul.addr %s344, 4
      %s346 = scalar_lea.vmem %s9, %s345
      %p347 = scmp.lt.s32.totalorder %s24, 1
      %s348 = scalar_select %p347, %s24, 1
      %p349 = scmp.lt.s32.totalorder %s25, 0
      %s350 = scalar_select %p349, %s25, 0
      %s351 = smul.addr %s348, 4
      %s352 = sadd.s32 %s350, %s351
      %s353 = smul.addr %s352, 8
      %s354 = scalar_lea.vmem %s0, %s353
      %p355 = scmp.lt.s32.totalorder %s24, 1
      %s356 = scalar_select %p355, %s24, 1
      %p357 = scmp.lt.s32.totalorder %s25, 0
      %s358 = scalar_select %p357, %s25, 0
      %s359 = sadd.s32 %s358, %s356
      %s360 = smul.addr %s359, 4
      %s361 = scalar_lea.vmem %s9, %s360
      %v362 = vld [vmem:[%s354] sm:$0xff]
      %v363 = vld [vmem:[%s354 + $0x8] sm:$0xff]
      %v364 = vld [vmem:[%s354 + $0x10] sm:$0xff]
      %v365 = vld [vmem:[%s354 + $0x18] sm:$0xff]
      %v366 = vld [vmem:[%s1] sm:$0xff]
      %v367 = vld [vmem:[%s1 + $0x8] sm:$0xff]
      %v368 = vld [vmem:[%s1 + $0x10] sm:$0xff]
      %v369 = vld [vmem:[%s1 + $0x18] sm:$0xff]
      %v370 = vmul.f32 %v362, %v362
      %v371 = vmul.f32 %v363, %v363
      %v372 = vmul.f32 %v364, %v364
      %v373 = vmul.f32 %v365, %v365
      %v374 = vld [vmem:[%s2] sm:$0xff]
      %v375 = vld [vmem:[%s2 + $0x8] sm:$0xff]
      %v376 = vld [vmem:[%s2 + $0x10] sm:$0xff]
      %v377 = vld [vmem:[%s2 + $0x18] sm:$0xff]
      %379 = vset.pattern.permute.xlu0 0
      %380 = vperm.xlu0 %379, %v374
      %v381 = vpop.permute.xlu0 %380
      %384 = vset.pattern.permute.xlu0 0
      %385 = vperm.xlu0 %384, %v375
      %v386 = vpop.permute.xlu0 %385
      %389 = vset.pattern.permute.xlu0 0
      %390 = vperm.xlu0 %389, %v376
      %v391 = vpop.permute.xlu0 %390
      %394 = vset.pattern.permute.xlu0 0
      %395 = vperm.xlu0 %394, %v377
      %v396 = vpop.permute.xlu0 %395
      %vm398 = vcmask 261120
      %v400 = vsel %vm398, %v366, 0
      %v403 = vsel %vm398, %v367, 0
      %v406 = vsel %vm398, %v368, 0
      %v409 = vsel %vm398, %v369, 0
      %411 = vmatprep.subr.mxu0 0.0
      %v412 = vand.u32 %v370, 4294901760
      %413 = vmatpush1.msra.mxu0 %v412
      %414 = vmatprep.subr.mxu0 0.0
      %v415 = vand.u32 %v371, 4294901760
      %416 = vmatpush1.msra.mxu0 %v415
      %417 = vmatprep.subr.mxu0 0.0
      %v418 = vand.u32 %v372, 4294901760
      %419 = vmatpush1.msra.mxu0 %v418
      %420 = vmatprep.subr.mxu0 0.0
      %v421 = vand.u32 %v373, 4294901760
      %422 = vmatpush1.msra.mxu0 %v421
      %423 = vmatprep.subr.mxu0 0.0
      %424 = vmatpush1.msra.mxu0 0.0
      %425 = vmatprep.subr.mxu0 0.0
      %426 = vmatpush1.msra.mxu0 0.0
      %427 = vmatprep.subr.mxu0 0.0
      %428 = vmatpush1.msra.mxu0 0.0
      %429 = vmatprep.subr.mxu0 0.0
      %430 = vmatpush1.msra.mxu0 0.0
      %431 = vmatprep.subr.mxu0 0.0
      %432 = vmatpush1.msra.mxu0 0.0
      %433 = vmatprep.subr.mxu0 0.0
      %434 = vmatpush1.msra.mxu0 0.0
      %435 = vmatprep.subr.mxu0 0.0
      %436 = vmatpush1.msra.mxu0 0.0
      %437 = vmatprep.subr.mxu0 0.0
      %438 = vmatpush1.msra.mxu0 0.0
      %439 = vmatprep.subr.mxu0 0.0
      %440 = vmatpush1.msra.mxu0 0.0
      %441 = vmatprep.subr.mxu0 0.0
      %442 = vmatpush1.msra.mxu0 0.0
      %443 = vmatprep.subr.mxu0 0.0
      %444 = vmatpush1.msra.mxu0 0.0
      %445 = vmatprep.subr.mxu0 0.0
      %446 = vmatpush1.msra.mxu0 0.0
      %447 = vmatprep.subr.mxu0 0.0
      %448 = vmatpush1.msra.mxu0 0.0
      %449 = vmatprep.subr.mxu0 0.0
      %450 = vmatpush1.msra.mxu0 0.0
      %451 = vmatprep.subr.mxu0 0.0
      %452 = vmatpush1.msra.mxu0 0.0
      %453 = vmatprep.subr.mxu0 0.0
      %454 = vmatpush1.msra.mxu0 0.0
      %455 = vmatprep.subr.mxu0 0.0
      %456 = vmatpush1.msra.mxu0 0.0
      %457 = vmatprep.subr.mxu0 0.0
      %458 = vmatpush1.msra.mxu0 0.0
      %459 = vmatprep.subr.mxu0 0.0
      %460 = vmatpush1.msra.mxu0 0.0
      %461 = vmatprep.subr.mxu0 0.0
      %462 = vmatpush1.msra.mxu0 0.0
      %463 = vmatprep.subr.mxu0 0.0
      %464 = vmatpush1.msra.mxu0 0.0
      %465 = vmatprep.subr.mxu0 0.0
      %466 = vmatpush1.msra.mxu0 0.0
      %467 = vmatprep.subr.mxu0 0.0
      %468 = vmatpush1.msra.mxu0 0.0
      %469 = vmatprep.subr.mxu0 0.0
      %470 = vmatpush1.msra.mxu0 0.0
      %471 = vmatprep.subr.mxu0 0.0
      %472 = vmatpush1.msra.mxu0 0.0
      %473 = vmatprep.subr.mxu0 0.0
      %474 = vmatpush1.msra.mxu0 0.0
      %475 = vmatprep.subr.mxu0 0.0
      %476 = vmatpush1.msra.mxu0 0.0
      %477 = vmatprep.subr.mxu0 0.0
      %478 = vmatpush1.msra.mxu0 0.0
      %479 = vmatprep.mubr.f32.mxu0 0.0
      %v480 = vand.u32 %v400, 4294901760
      %v481 = vsub.f32 %v400, %v480
      %v482 = vand.u32 %v481, 4294901760
      %v483 = vsub.f32 %v481, %v482
      %v484 = vand.u32 %v483, 4294901760
      %485 = vmatmul.mubr.f32.gmra.mrb[0].mxu0 %v484
      %v486 = vpop.f32.mrb[0].mxu0
      %v487 = vadd.f32 %v381, %v486
      %v488 = vpop.f32.mrb[0].mxu0
      %489 = vmatprep.mubr.f32.mxu0 0.0
      %v490 = vand.u32 %v403, 4294901760
      %v491 = vsub.f32 %v403, %v490
      %v492 = vand.u32 %v491, 4294901760
      %v493 = vsub.f32 %v491, %v492
      %v494 = vand.u32 %v493, 4294901760
      %495 = vmatmul.mubr.f32.gmra.mrb[0].mxu0 %v494
      %v496 = vpop.f32.mrb[0].mxu0
      %v497 = vadd.f32 %v386, %v496
      %v498 = vpop.f32.mrb[0].mxu0
      %499 = vmatprep.mubr.f32.mxu0 0.0
      %v500 = vand.u32 %v406, 4294901760
      %v501 = vsub.f32 %v406, %v500
      %v502 = vand.u32 %v501, 4294901760
      %v503 = vsub.f32 %v501, %v502
      %v504 = vand.u32 %v503, 4294901760
      %505 = vmatmul.mubr.f32.gmra.mrb[0].mxu0 %v504
      %v506 = vpop.f32.mrb[0].mxu0
      %v507 = vadd.f32 %v391, %v506
      %v508 = vpop.f32.mrb[0].mxu0
      %509 = vmatprep.mubr.f32.mxu0 0.0
      %v510 = vand.u32 %v409, 4294901760
      %v511 = vsub.f32 %v409, %v510
      %v512 = vand.u32 %v511, 4294901760
      %v513 = vsub.f32 %v511, %v512
      %v514 = vand.u32 %v513, 4294901760
      %515 = vmatmul.mubr.f32.gmra.mrb[0].mxu0 %v514
      %v516 = vpop.f32.mrb[0].mxu0
      %v517 = vadd.f32 %v396, %v516
      %v518 = vpop.f32.mrb[0].mxu0
      %519 = vdwg.mxu0
      %520 = vmatprep.subr.mxu0 0.0
      %v521 = vand.u32 %v370, 4294901760
      %v522 = vsub.f32 %v370, %v521
      %v523 = vand.u32 %v522, 4294901760
      %v524 = vsub.f32 %v522, %v523
      %v525 = vand.u32 %v524, 4294901760
      %526 = vmatpush1.msra.mxu0 %v525
      %527 = vmatprep.subr.mxu0 0.0
      %v528 = vand.u32 %v371, 4294901760
      %v529 = vsub.f32 %v371, %v528
      %v530 = vand.u32 %v529, 4294901760
      %v531 = vsub.f32 %v529, %v530
      %v532 = vand.u32 %v531, 4294901760
      %533 = vmatpush1.msra.mxu0 %v532
      %534 = vmatprep.subr.mxu0 0.0
      %v535 = vand.u32 %v372, 4294901760
      %v536 = vsub.f32 %v372, %v535
      %v537 = vand.u32 %v536, 4294901760
      %v538 = vsub.f32 %v536, %v537
      %v539 = vand.u32 %v538, 4294901760
      %540 = vmatpush1.msra.mxu0 %v539
      %541 = vmatprep.subr.mxu0 0.0
      %v542 = vand.u32 %v373, 4294901760
      %v543 = vsub.f32 %v373, %v542
      %v544 = vand.u32 %v543, 4294901760
      %v545 = vsub.f32 %v543, %v544
      %v546 = vand.u32 %v545, 4294901760
      %547 = vmatpush1.msra.mxu0 %v546
      %548 = vmatprep.subr.mxu0 0.0
      %549 = vmatpush1.msra.mxu0 0.0
      %550 = vmatprep.subr.mxu0 0.0
      %551 = vmatpush1.msra.mxu0 0.0
      %552 = vmatprep.subr.mxu0 0.0
      %553 = vmatpush1.msra.mxu0 0.0
      %554 = vmatprep.subr.mxu0 0.0
      %555 = vmatpush1.msra.mxu0 0.0
      %556 = vmatprep.subr.mxu0 0.0
      %557 = vmatpush1.msra.mxu0 0.0
      %558 = vmatprep.subr.mxu0 0.0
      %559 = vmatpush1.msra.mxu0 0.0
      %560 = vmatprep.subr.mxu0 0.0
      %561 = vmatpush1.msra.mxu0 0.0
      %562 = vmatprep.subr.mxu0 0.0
      %563 = vmatpush1.msra.mxu0 0.0
      %564 = vmatprep.subr.mxu0 0.0
      %565 = vmatpush1.msra.mxu0 0.0
      %566 = vmatprep.subr.mxu0 0.0
      %567 = vmatpush1.msra.mxu0 0.0
      %568 = vmatprep.subr.mxu0 0.0
      %569 = vmatpush1.msra.mxu0 0.0
      %570 = vmatprep.subr.mxu0 0.0
      %571 = vmatpush1.msra.mxu0 0.0
      %572 = vmatprep.subr.mxu0 0.0
      %573 = vmatpush1.msra.mxu0 0.0
      %574 = vmatprep.subr.mxu0 0.0
      %575 = vmatpush1.msra.mxu0 0.0
      %576 = vmatprep.subr.mxu0 0.0
      %577 = vmatpush1.msra.mxu0 0.0
      %578 = vmatprep.subr.mxu0 0.0
      %579 = vmatpush1.msra.mxu0 0.0
      %580 = vmatprep.subr.mxu0 0.0
      %581 = vmatpush1.msra.mxu0 0.0
      %582 = vmatprep.subr.mxu0 0.0
      %583 = vmatpush1.msra.mxu0 0.0
      %584 = vmatprep.subr.mxu0 0.0
      %585 = vmatpush1.msra.mxu0 0.0
      %586 = vmatprep.subr.mxu0 0.0
      %587 = vmatpush1.msra.mxu0 0.0
      %588 = vmatprep.subr.mxu0 0.0
      %589 = vmatpush1.msra.mxu0 0.0
      %590 = vmatprep.subr.mxu0 0.0
      %591 = vmatpush1.msra.mxu0 0.0
      %592 = vmatprep.subr.mxu0 0.0
      %593 = vmatpush1.msra.mxu0 0.0
      %594 = vmatprep.subr.mxu0 0.0
      %595 = vmatpush1.msra.mxu0 0.0
      %596 = vmatprep.subr.mxu0 0.0
      %597 = vmatpush1.msra.mxu0 0.0
      %598 = vmatprep.subr.mxu0 0.0
      %599 = vmatpush1.msra.mxu0 0.0
      %600 = vmatprep.subr.mxu0 0.0
      %601 = vmatpush1.msra.mxu0 0.0
      %602 = vmatprep.subr.mxu0 0.0
      %603 = vmatpush1.msra.mxu0 0.0
      %604 = vmatprep.mubr.f32.mxu0 0.0
      %v605 = vand.u32 %v400, 4294901760
      %606 = vmatmul.mubr.f32.gmra.mrb[0].mxu0 %v605
      %v607 = vpop.f32.mrb[0].mxu0
      %v608 = vadd.f32 %v487, %v607
      %v609 = vpop.f32.mrb[0].mxu0
      %610 = vmatprep.mubr.f32.mxu0 0.0
      %v611 = vand.u32 %v403, 4294901760
      %612 = vmatmul.mubr.f32.gmra.mrb[0].mxu0 %v611
      %v613 = vpop.f32.mrb[0].mxu0
      %v614 = vadd.f32 %v497, %v613
      %v615 = vpop.f32.mrb[0].mxu0
      %616 = vmatprep.mubr.f32.mxu0 0.0
      %v617 = vand.u32 %v406, 4294901760
      %618 = vmatmul.mubr.f32.gmra.mrb[0].mxu0 %v617
      %v619 = vpop.f32.mrb[0].mxu0
      %v620 = vadd.f32 %v507, %v619
      %v621 = vpop.f32.mrb[0].mxu0
      %622 = vmatprep.mubr.f32.mxu0 0.0
      %v623 = vand.u32 %v409, 4294901760
      %624 = vmatmul.mubr.f32.gmra.mrb[0].mxu0 %v623
      %v625 = vpop.f32.mrb[0].mxu0
      %v626 = vadd.f32 %v517, %v625
      %v627 = vpop.f32.mrb[0].mxu0
      %628 = vdwg.mxu0
      %629 = vmatprep.subr.mxu0 0.0
      %v630 = vand.u32 %v370, 4294901760
      %v631 = vsub.f32 %v370, %v630
      %632 = vmatpush1.msra.mxu0 %v631
      %633 = vmatprep.subr.mxu0 0.0
      %v634 = vand.u32 %v371, 4294901760
      %v635 = vsub.f32 %v371, %v634
      %636 = vmatpush1.msra.mxu0 %v635
      %637 = vmatprep.subr.mxu0 0.0
      %v638 = vand.u32 %v372, 4294901760
      %v639 = vsub.f32 %v372, %v638
      %640 = vmatpush1.msra.mxu0 %v639
      %641 = vmatprep.subr.mxu0 0.0
      %v642 = vand.u32 %v373, 4294901760
      %v643 = vsub.f32 %v373, %v642
      %644 = vmatpush1.msra.mxu0 %v643
      %645 = vmatprep.subr.mxu0 0.0
      %646 = vmatpush1.msra.mxu0 0.0
      %647 = vmatprep.subr.mxu0 0.0
      %648 = vmatpush1.msra.mxu0 0.0
      %649 = vmatprep.subr.mxu0 0.0
      %650 = vmatpush1.msra.mxu0 0.0
      %651 = vmatprep.subr.mxu0 0.0
      %652 = vmatpush1.msra.mxu0 0.0
      %653 = vmatprep.subr.mxu0 0.0
      %654 = vmatpush1.msra.mxu0 0.0
      %655 = vmatprep.subr.mxu0 0.0
      %656 = vmatpush1.msra.mxu0 0.0
      %657 = vmatprep.subr.mxu0 0.0
      %658 = vmatpush1.msra.mxu0 0.0
      %659 = vmatprep.subr.mxu0 0.0
      %660 = vmatpush1.msra.mxu0 0.0
      %661 = vmatprep.subr.mxu0 0.0
      %662 = vmatpush1.msra.mxu0 0.0
      %663 = vmatprep.subr.mxu0 0.0
      %664 = vmatpush1.msra.mxu0 0.0
      %665 = vmatprep.subr.mxu0 0.0
      %666 = vmatpush1.msra.mxu0 0.0
      %667 = vmatprep.subr.mxu0 0.0
      %668 = vmatpush1.msra.mxu0 0.0
      %669 = vmatprep.subr.mxu0 0.0
      %670 = vmatpush1.msra.mxu0 0.0
      %671 = vmatprep.subr.mxu0 0.0
      %672 = vmatpush1.msra.mxu0 0.0
      %673 = vmatprep.subr.mxu0 0.0
      %674 = vmatpush1.msra.mxu0 0.0
      %675 = vmatprep.subr.mxu0 0.0
      %676 = vmatpush1.msra.mxu0 0.0
      %677 = vmatprep.subr.mxu0 0.0
      %678 = vmatpush1.msra.mxu0 0.0
      %679 = vmatprep.subr.mxu0 0.0
      %680 = vmatpush1.msra.mxu0 0.0
      %681 = vmatprep.subr.mxu0 0.0
      %682 = vmatpush1.msra.mxu0 0.0
      %683 = vmatprep.subr.mxu0 0.0
      %684 = vmatpush1.msra.mxu0 0.0
      %685 = vmatprep.subr.mxu0 0.0
      %686 = vmatpush1.msra.mxu0 0.0
      %687 = vmatprep.subr.mxu0 0.0
      %688 = vmatpush1.msra.mxu0 0.0
      %689 = vmatprep.subr.mxu0 0.0
      %690 = vmatpush1.msra.mxu0 0.0
      %691 = vmatprep.subr.mxu0 0.0
      %692 = vmatpush1.msra.mxu0 0.0
      %693 = vmatprep.subr.mxu0 0.0
      %694 = vmatpush1.msra.mxu0 0.0
      %695 = vmatprep.subr.mxu0 0.0
      %696 = vmatpush1.msra.mxu0 0.0
      %697 = vmatprep.subr.mxu0 0.0
      %698 = vmatpush1.msra.mxu0 0.0
      %699 = vmatprep.subr.mxu0 0.0
      %700 = vmatpush1.msra.mxu0 0.0
      %701 = vmatprep.mubr.f32.mxu0 0.0
      %v702 = vand.u32 %v400, 4294901760
      %v703 = vsub.f32 %v400, %v702
      %704 = vmatmul.mubr.f32.gmra.mrb[0].mxu0 %v703
      %v705 = vpop.f32.mrb[0].mxu0
      %v706 = vadd.f32 %v608, %v705
      %v707 = vpop.f32.mrb[0].mxu0
      %708 = vmatprep.mubr.f32.mxu0 0.0
      %v709 = vand.u32 %v403, 4294901760
      %v710 = vsub.f32 %v403, %v709
      %711 = vmatmul.mubr.f32.gmra.mrb[0].mxu0 %v710
      %v712 = vpop.f32.mrb[0].mxu0
      %v713 = vadd.f32 %v614, %v712
      %v714 = vpop.f32.mrb[0].mxu0
      %715 = vmatprep.mubr.f32.mxu0 0.0
      %v716 = vand.u32 %v406, 4294901760
      %v717 = vsub.f32 %v406, %v716
      %718 = vmatmul.mubr.f32.gmra.mrb[0].mxu0 %v717
      %v719 = vpop.f32.mrb[0].mxu0
      %v720 = vadd.f32 %v620, %v719
      %v721 = vpop.f32.mrb[0].mxu0
      %722 = vmatprep.mubr.f32.mxu0 0.0
      %v723 = vand.u32 %v409, 4294901760
      %v724 = vsub.f32 %v409, %v723
      %725 = vmatmul.mubr.f32.gmra.mrb[0].mxu0 %v724
      %v726 = vpop.f32.mrb[0].mxu0
      %v727 = vadd.f32 %v626, %v726
      %v728 = vpop.f32.mrb[0].mxu0
      %729 = vdwg.mxu0
      %730 = vmatprep.subr.mxu0 0.0
      %v731 = vand.u32 %v370, 4294901760
      %732 = vmatpush1.msra.mxu0 %v731
      %733 = vmatprep.subr.mxu0 0.0
      %v734 = vand.u32 %v371, 4294901760
      %735 = vmatpush1.msra.mxu0 %v734
      %736 = vmatprep.subr.mxu0 0.0
      %v737 = vand.u32 %v372, 4294901760
      %738 = vmatpush1.msra.mxu0 %v737
      %739 = vmatprep.subr.mxu0 0.0
      %v740 = vand.u32 %v373, 4294901760
      %741 = vmatpush1.msra.mxu0 %v740
      %742 = vmatprep.subr.mxu0 0.0
      %743 = vmatpush1.msra.mxu0 0.0
      %744 = vmatprep.subr.mxu0 0.0
      %745 = vmatpush1.msra.mxu0 0.0
      %746 = vmatprep.subr.mxu0 0.0
      %747 = vmatpush1.msra.mxu0 0.0
      %748 = vmatprep.subr.mxu0 0.0
      %749 = vmatpush1.msra.mxu0 0.0
      %750 = vmatprep.subr.mxu0 0.0
      %751 = vmatpush1.msra.mxu0 0.0
      %752 = vmatprep.subr.mxu0 0.0
      %753 = vmatpush1.msra.mxu0 0.0
      %754 = vmatprep.subr.mxu0 0.0
      %755 = vmatpush1.msra.mxu0 0.0
      %756 = vmatprep.subr.mxu0 0.0
      %757 = vmatpush1.msra.mxu0 0.0
      %758 = vmatprep.subr.mxu0 0.0
      %759 = vmatpush1.msra.mxu0 0.0
      %760 = vmatprep.subr.mxu0 0.0
      %761 = vmatpush1.msra.mxu0 0.0
      %762 = vmatprep.subr.mxu0 0.0
      %763 = vmatpush1.msra.mxu0 0.0
      %764 = vmatprep.subr.mxu0 0.0
      %765 = vmatpush1.msra.mxu0 0.0
      %766 = vmatprep.subr.mxu0 0.0
      %767 = vmatpush1.msra.mxu0 0.0
      %768 = vmatprep.subr.mxu0 0.0
      %769 = vmatpush1.msra.mxu0 0.0
      %770 = vmatprep.subr.mxu0 0.0
      %771 = vmatpush1.msra.mxu0 0.0
      %772 = vmatprep.subr.mxu0 0.0
      %773 = vmatpush1.msra.mxu0 0.0
      %774 = vmatprep.subr.mxu0 0.0
      %775 = vmatpush1.msra.mxu0 0.0
      %776 = vmatprep.subr.mxu0 0.0
      %777 = vmatpush1.msra.mxu0 0.0
      %778 = vmatprep.subr.mxu0 0.0
      %779 = vmatpush1.msra.mxu0 0.0
      %780 = vmatprep.subr.mxu0 0.0
      %781 = vmatpush1.msra.mxu0 0.0
      %782 = vmatprep.subr.mxu0 0.0
      %783 = vmatpush1.msra.mxu0 0.0
      %784 = vmatprep.subr.mxu0 0.0
      %785 = vmatpush1.msra.mxu0 0.0
      %786 = vmatprep.subr.mxu0 0.0
      %787 = vmatpush1.msra.mxu0 0.0
      %788 = vmatprep.subr.mxu0 0.0
      %789 = vmatpush1.msra.mxu0 0.0
      %790 = vmatprep.subr.mxu0 0.0
      %791 = vmatpush1.msra.mxu0 0.0
      %792 = vmatprep.subr.mxu0 0.0
      %793 = vmatpush1.msra.mxu0 0.0
      %794 = vmatprep.subr.mxu0 0.0
      %795 = vmatpush1.msra.mxu0 0.0
      %796 = vmatprep.subr.mxu0 0.0
      %797 = vmatpush1.msra.mxu0 0.0
      %798 = vmatprep.mubr.f32.mxu0 0.0
      %v799 = vand.u32 %v400, 4294901760
      %v800 = vsub.f32 %v400, %v799
      %v801 = vand.u32 %v800, 4294901760
      %802 = vmatmul.mubr.f32.gmra.mrb[0].mxu0 %v801
      %v803 = vpop.f32.mrb[0].mxu0
      %v804 = vadd.f32 %v706, %v803
      %v805 = vpop.f32.mrb[0].mxu0
      %806 = vmatprep.mubr.f32.mxu0 0.0
      %v807 = vand.u32 %v403, 4294901760
      %v808 = vsub.f32 %v403, %v807
      %v809 = vand.u32 %v808, 4294901760
      %810 = vmatmul.mubr.f32.gmra.mrb[0].mxu0 %v809
      %v811 = vpop.f32.mrb[0].mxu0
      %v812 = vadd.f32 %v713, %v811
      %v813 = vpop.f32.mrb[0].mxu0
      %814 = vmatprep.mubr.f32.mxu0 0.0
      %v815 = vand.u32 %v406, 4294901760
      %v816 = vsub.f32 %v406, %v815
      %v817 = vand.u32 %v816, 4294901760
      %818 = vmatmul.mubr.f32.gmra.mrb[0].mxu0 %v817
      %v819 = vpop.f32.mrb[0].mxu0
      %v820 = vadd.f32 %v720, %v819
      %v821 = vpop.f32.mrb[0].mxu0
      %822 = vmatprep.mubr.f32.mxu0 0.0
      %v823 = vand.u32 %v409, 4294901760
      %v824 = vsub.f32 %v409, %v823
      %v825 = vand.u32 %v824, 4294901760
      %826 = vmatmul.mubr.f32.gmra.mrb[0].mxu0 %v825
      %v827 = vpop.f32.mrb[0].mxu0
      %v828 = vadd.f32 %v727, %v827
      %v829 = vpop.f32.mrb[0].mxu0
      %830 = vdwg.mxu0
      %831 = vmatprep.subr.mxu0 0.0
      %v832 = vand.u32 %v370, 4294901760
      %v833 = vsub.f32 %v370, %v832
      %v834 = vand.u32 %v833, 4294901760
      %835 = vmatpush1.msra.mxu0 %v834
      %836 = vmatprep.subr.mxu0 0.0
      %v837 = vand.u32 %v371, 4294901760
      %v838 = vsub.f32 %v371, %v837
      %v839 = vand.u32 %v838, 4294901760
      %840 = vmatpush1.msra.mxu0 %v839
      %841 = vmatprep.subr.mxu0 0.0
      %v842 = vand.u32 %v372, 4294901760
      %v843 = vsub.f32 %v372, %v842
      %v844 = vand.u32 %v843, 4294901760
      %845 = vmatpush1.msra.mxu0 %v844
      %846 = vmatprep.subr.mxu0 0.0
      %v847 = vand.u32 %v373, 4294901760
      %v848 = vsub.f32 %v373, %v847
      %v849 = vand.u32 %v848, 4294901760
      %850 = vmatpush1.msra.mxu0 %v849
      %851 = vmatprep.subr.mxu0 0.0
      %852 = vmatpush1.msra.mxu0 0.0
      %853 = vmatprep.subr.mxu0 0.0
      %854 = vmatpush1.msra.mxu0 0.0
      %855 = vmatprep.subr.mxu0 0.0
      %856 = vmatpush1.msra.mxu0 0.0
      %857 = vmatprep.subr.mxu0 0.0
      %858 = vmatpush1.msra.mxu0 0.0
      %859 = vmatprep.subr.mxu0 0.0
      %860 = vmatpush1.msra.mxu0 0.0
      %861 = vmatprep.subr.mxu0 0.0
      %862 = vmatpush1.msra.mxu0 0.0
      %863 = vmatprep.subr.mxu0 0.0
      %864 = vmatpush1.msra.mxu0 0.0
      %865 = vmatprep.subr.mxu0 0.0
      %866 = vmatpush1.msra.mxu0 0.0
      %867 = vmatprep.subr.mxu0 0.0
      %868 = vmatpush1.msra.mxu0 0.0
      %869 = vmatprep.subr.mxu0 0.0
      %870 = vmatpush1.msra.mxu0 0.0
      %871 = vmatprep.subr.mxu0 0.0
      %872 = vmatpush1.msra.mxu0 0.0
      %873 = vmatprep.subr.mxu0 0.0
      %874 = vmatpush1.msra.mxu0 0.0
      %875 = vmatprep.subr.mxu0 0.0
      %876 = vmatpush1.msra.mxu0 0.0
      %877 = vmatprep.subr.mxu0 0.0
      %878 = vmatpush1.msra.mxu0 0.0
      %879 = vmatprep.subr.mxu0 0.0
      %880 = vmatpush1.msra.mxu0 0.0
      %881 = vmatprep.subr.mxu0 0.0
      %882 = vmatpush1.msra.mxu0 0.0
      %883 = vmatprep.subr.mxu0 0.0
      %884 = vmatpush1.msra.mxu0 0.0
      %885 = vmatprep.subr.mxu0 0.0
      %886 = vmatpush1.msra.mxu0 0.0
      %887 = vmatprep.subr.mxu0 0.0
      %888 = vmatpush1.msra.mxu0 0.0
      %889 = vmatprep.subr.mxu0 0.0
      %890 = vmatpush1.msra.mxu0 0.0
      %891 = vmatprep.subr.mxu0 0.0
      %892 = vmatpush1.msra.mxu0 0.0
      %893 = vmatprep.subr.mxu0 0.0
      %894 = vmatpush1.msra.mxu0 0.0
      %895 = vmatprep.subr.mxu0 0.0
      %896 = vmatpush1.msra.mxu0 0.0
      %897 = vmatprep.subr.mxu0 0.0
      %898 = vmatpush1.msra.mxu0 0.0
      %899 = vmatprep.subr.mxu0 0.0
      %900 = vmatpush1.msra.mxu0 0.0
      %901 = vmatprep.subr.mxu0 0.0
      %902 = vmatpush1.msra.mxu0 0.0
      %903 = vmatprep.subr.mxu0 0.0
      %904 = vmatpush1.msra.mxu0 0.0
      %905 = vmatprep.subr.mxu0 0.0
      %906 = vmatpush1.msra.mxu0 0.0
      %907 = vmatprep.mubr.f32.mxu0 0.0
      %v908 = vand.u32 %v400, 4294901760
      %909 = vmatmul.mubr.f32.gmra.mrb[0].mxu0 %v908
      %v910 = vpop.f32.mrb[0].mxu0
      %v911 = vadd.f32 %v804, %v910
      %v912 = vpop.f32.mrb[0].mxu0
      %913 = vmatprep.mubr.f32.mxu0 0.0
      %v914 = vand.u32 %v403, 4294901760
      %915 = vmatmul.mubr.f32.gmra.mrb[0].mxu0 %v914
      %v916 = vpop.f32.mrb[0].mxu0
      %v917 = vadd.f32 %v812, %v916
      %v918 = vpop.f32.mrb[0].mxu0
      %919 = vmatprep.mubr.f32.mxu0 0.0
      %v920 = vand.u32 %v406, 4294901760
      %921 = vmatmul.mubr.f32.gmra.mrb[0].mxu0 %v920
      %v922 = vpop.f32.mrb[0].mxu0
      %v923 = vadd.f32 %v820, %v922
      %v924 = vpop.f32.mrb[0].mxu0
      %925 = vmatprep.mubr.f32.mxu0 0.0
      %v926 = vand.u32 %v409, 4294901760
      %927 = vmatmul.mubr.f32.gmra.mrb[0].mxu0 %v926
      %v928 = vpop.f32.mrb[0].mxu0
      %v929 = vadd.f32 %v828, %v928
      %v930 = vpop.f32.mrb[0].mxu0
      %931 = vdwg.mxu0
      %932 = vmatprep.subr.mxu0 0.0
      %v933 = vand.u32 %v370, 4294901760
      %934 = vmatpush1.msra.mxu0 %v933
      %935 = vmatprep.subr.mxu0 0.0
      %v936 = vand.u32 %v371, 4294901760
      %937 = vmatpush1.msra.mxu0 %v936
      %938 = vmatprep.subr.mxu0 0.0
      %v939 = vand.u32 %v372, 4294901760
      %940 = vmatpush1.msra.mxu0 %v939
      %941 = vmatprep.subr.mxu0 0.0
      %v942 = vand.u32 %v373, 4294901760
      %943 = vmatpush1.msra.mxu0 %v942
      %944 = vmatprep.subr.mxu0 0.0
      %945 = vmatpush1.msra.mxu0 0.0
      %946 = vmatprep.subr.mxu0 0.0
      %947 = vmatpush1.msra.mxu0 0.0
      %948 = vmatprep.subr.mxu0 0.0
      %949 = vmatpush1.msra.mxu0 0.0
      %950 = vmatprep.subr.mxu0 0.0
      %951 = vmatpush1.msra.mxu0 0.0
      %952 = vmatprep.subr.mxu0 0.0
      %953 = vmatpush1.msra.mxu0 0.0
      %954 = vmatprep.subr.mxu0 0.0
      %955 = vmatpush1.msra.mxu0 0.0
      %956 = vmatprep.subr.mxu0 0.0
      %957 = vmatpush1.msra.mxu0 0.0
      %958 = vmatprep.subr.mxu0 0.0
      %959 = vmatpush1.msra.mxu0 0.0
      %960 = vmatprep.subr.mxu0 0.0
      %961 = vmatpush1.msra.mxu0 0.0
      %962 = vmatprep.subr.mxu0 0.0
      %963 = vmatpush1.msra.mxu0 0.0
      %964 = vmatprep.subr.mxu0 0.0
      %965 = vmatpush1.msra.mxu0 0.0
      %966 = vmatprep.subr.mxu0 0.0
      %967 = vmatpush1.msra.mxu0 0.0
      %968 = vmatprep.subr.mxu0 0.0
      %969 = vmatpush1.msra.mxu0 0.0
      %970 = vmatprep.subr.mxu0 0.0
      %971 = vmatpush1.msra.mxu0 0.0
      %972 = vmatprep.subr.mxu0 0.0
      %973 = vmatpush1.msra.mxu0 0.0
      %974 = vmatprep.subr.mxu0 0.0
      %975 = vmatpush1.msra.mxu0 0.0
      %976 = vmatprep.subr.mxu0 0.0
      %977 = vmatpush1.msra.mxu0 0.0
      %978 = vmatprep.subr.mxu0 0.0
      %979 = vmatpush1.msra.mxu0 0.0
      %980 = vmatprep.subr.mxu0 0.0
      %981 = vmatpush1.msra.mxu0 0.0
      %982 = vmatprep.subr.mxu0 0.0
      %983 = vmatpush1.msra.mxu0 0.0
      %984 = vmatprep.subr.mxu0 0.0
      %985 = vmatpush1.msra.mxu0 0.0
      %986 = vmatprep.subr.mxu0 0.0
      %987 = vmatpush1.msra.mxu0 0.0
      %988 = vmatprep.subr.mxu0 0.0
      %989 = vmatpush1.msra.mxu0 0.0
      %990 = vmatprep.subr.mxu0 0.0
      %991 = vmatpush1.msra.mxu0 0.0
      %992 = vmatprep.subr.mxu0 0.0
      %993 = vmatpush1.msra.mxu0 0.0
      %994 = vmatprep.subr.mxu0 0.0
      %995 = vmatpush1.msra.mxu0 0.0
      %996 = vmatprep.subr.mxu0 0.0
      %997 = vmatpush1.msra.mxu0 0.0
      %998 = vmatprep.subr.mxu0 0.0
      %999 = vmatpush1.msra.mxu0 0.0
      %1000 = vmatprep.mubr.f32.mxu0 0.0
      %v1001 = vand.u32 %v400, 4294901760
      %1002 = vmatmul.mubr.f32.gmra.mrb[0].mxu0 %v1001
      %v1003 = vpop.f32.mrb[0].mxu0
      %v1004 = vadd.f32 %v911, %v1003
      %v1005 = vpop.f32.mrb[0].mxu0
      %1006 = vmatprep.mubr.f32.mxu0 0.0
      %v1007 = vand.u32 %v403, 4294901760
      %1008 = vmatmul.mubr.f32.gmra.mrb[0].mxu0 %v1007
      %v1009 = vpop.f32.mrb[0].mxu0
      %v1010 = vadd.f32 %v917, %v1009
      %v1011 = vpop.f32.mrb[0].mxu0
      %1012 = vmatprep.mubr.f32.mxu0 0.0
      %v1013 = vand.u32 %v406, 4294901760
      %1014 = vmatmul.mubr.f32.gmra.mrb[0].mxu0 %v1013
      %v1015 = vpop.f32.mrb[0].mxu0
      %v1016 = vadd.f32 %v923, %v1015
      %v1017 = vpop.f32.mrb[0].mxu0
      %1018 = vmatprep.mubr.f32.mxu0 0.0
      %v1019 = vand.u32 %v409, 4294901760
      %1020 = vmatmul.mubr.f32.gmra.mrb[0].mxu0 %v1019
      %v1021 = vpop.f32.mrb[0].mxu0
      %v1022 = vadd.f32 %v929, %v1021
      %v1023 = vpop.f32.mrb[0].mxu0
      %1024 = vdwg.mxu0
      %v1025 = vmax.f32 %v1004, 1e-20
      %v1026 = vmax.f32 %v1010, 1e-20
      %v1027 = vmax.f32 %v1016, 1e-20
      %v1028 = vmax.f32 %v1022, 1e-20
      %v1029 = vrsqrt.pop %v1025
      %v1030 = vrsqrt.pop %v1026
      %v1031 = vrsqrt.pop %v1027
      %v1032 = vrsqrt.pop %v1028
      %v1033 = vmul.f32 %v362, %v1029
      %v1034 = vmul.f32 %v363, %v1030
      %v1035 = vmul.f32 %v364, %v1031
      %v1036 = vmul.f32 %v365, %v1032
      %v1037 = vld [vmem:[%s3] sm:$0xff]
      %v1038 = vld [vmem:[%s4] sm:$0xff]
      %1040 = vset.pattern.permute.xlu0 0
      %1041 = vperm.xlu0 %1040, %v1038
      %v1042 = vpop.permute.xlu0 %1041
      %v1045 = vsel %vm398, %v1037, 0
      %1047 = vmatprep.subr.mxu0 0.0
      %v1048 = vand.u32 %v1033, 4294901760
      %1049 = vmatpush1.msra.mxu0 %v1048
      %1050 = vmatprep.subr.mxu0 0.0
      %v1051 = vand.u32 %v1034, 4294901760
      %1052 = vmatpush1.msra.mxu0 %v1051
      %1053 = vmatprep.subr.mxu0 0.0
      %v1054 = vand.u32 %v1035, 4294901760
      %1055 = vmatpush1.msra.mxu0 %v1054
      %1056 = vmatprep.subr.mxu0 0.0
      %v1057 = vand.u32 %v1036, 4294901760
      %1058 = vmatpush1.msra.mxu0 %v1057
      %1059 = vmatprep.subr.mxu0 0.0
      %1060 = vmatpush1.msra.mxu0 0.0
      %1061 = vmatprep.subr.mxu0 0.0
      %1062 = vmatpush1.msra.mxu0 0.0
      %1063 = vmatprep.subr.mxu0 0.0
      %1064 = vmatpush1.msra.mxu0 0.0
      %1065 = vmatprep.subr.mxu0 0.0
      %1066 = vmatpush1.msra.mxu0 0.0
      %1067 = vmatprep.subr.mxu0 0.0
      %1068 = vmatpush1.msra.mxu0 0.0
      %1069 = vmatprep.subr.mxu0 0.0
      %1070 = vmatpush1.msra.mxu0 0.0
      %1071 = vmatprep.subr.mxu0 0.0
      %1072 = vmatpush1.msra.mxu0 0.0
      %1073 = vmatprep.subr.mxu0 0.0
      %1074 = vmatpush1.msra.mxu0 0.0
      %1075 = vmatprep.subr.mxu0 0.0
      %1076 = vmatpush1.msra.mxu0 0.0
      %1077 = vmatprep.subr.mxu0 0.0
      %1078 = vmatpush1.msra.mxu0 0.0
      %1079 = vmatprep.subr.mxu0 0.0
      %1080 = vmatpush1.msra.mxu0 0.0
      %1081 = vmatprep.subr.mxu0 0.0
      %1082 = vmatpush1.msra.mxu0 0.0
      %1083 = vmatprep.subr.mxu0 0.0
      %1084 = vmatpush1.msra.mxu0 0.0
      %1085 = vmatprep.subr.mxu0 0.0
      %1086 = vmatpush1.msra.mxu0 0.0
      %1087 = vmatprep.subr.mxu0 0.0
      %1088 = vmatpush1.msra.mxu0 0.0
      %1089 = vmatprep.subr.mxu0 0.0
      %1090 = vmatpush1.msra.mxu0 0.0
      %1091 = vmatprep.subr.mxu0 0.0
      %1092 = vmatpush1.msra.mxu0 0.0
      %1093 = vmatprep.subr.mxu0 0.0
      %1094 = vmatpush1.msra.mxu0 0.0
      %1095 = vmatprep.subr.mxu0 0.0
      %1096 = vmatpush1.msra.mxu0 0.0
      %1097 = vmatprep.subr.mxu0 0.0
      %1098 = vmatpush1.msra.mxu0 0.0
      %1099 = vmatprep.subr.mxu0 0.0
      %1100 = vmatpush1.msra.mxu0 0.0
      %1101 = vmatprep.subr.mxu0 0.0
      %1102 = vmatpush1.msra.mxu0 0.0
      %1103 = vmatprep.subr.mxu0 0.0
      %1104 = vmatpush1.msra.mxu0 0.0
      %1105 = vmatprep.subr.mxu0 0.0
      %1106 = vmatpush1.msra.mxu0 0.0
      %1107 = vmatprep.subr.mxu0 0.0
      %1108 = vmatpush1.msra.mxu0 0.0
      %1109 = vmatprep.subr.mxu0 0.0
      %1110 = vmatpush1.msra.mxu0 0.0
      %1111 = vmatprep.subr.mxu0 0.0
      %1112 = vmatpush1.msra.mxu0 0.0
      %1113 = vmatprep.subr.mxu0 0.0
      %1114 = vmatpush1.msra.mxu0 0.0
      %1115 = vmatprep.mubr.f32.mxu0 0.0
      %v1116 = vand.u32 %v1045, 4294901760
      %v1117 = vsub.f32 %v1045, %v1116
      %v1118 = vand.u32 %v1117, 4294901760
      %v1119 = vsub.f32 %v1117, %v1118
      %v1120 = vand.u32 %v1119, 4294901760
      %1121 = vmatmul.mubr.f32.gmra.mrb[0].mxu0 %v1120
      %v1122 = vpop.f32.mrb[0].mxu0
      %v1123 = vadd.f32 %v1042, %v1122
      %v1124 = vpop.f32.mrb[0].mxu0
      %1125 = vdwg.mxu0
      %1126 = vmatprep.subr.mxu0 0.0
      %v1127 = vand.u32 %v1033, 4294901760
      %v1128 = vsub.f32 %v1033, %v1127
      %v1129 = vand.u32 %v1128, 4294901760
      %v1130 = vsub.f32 %v1128, %v1129
      %v1131 = vand.u32 %v1130, 4294901760
      %1132 = vmatpush1.msra.mxu0 %v1131
      %1133 = vmatprep.subr.mxu0 0.0
      %v1134 = vand.u32 %v1034, 4294901760
      %v1135 = vsub.f32 %v1034, %v1134
      %v1136 = vand.u32 %v1135, 4294901760
      %v1137 = vsub.f32 %v1135, %v1136
      %v1138 = vand.u32 %v1137, 4294901760
      %1139 = vmatpush1.msra.mxu0 %v1138
      %1140 = vmatprep.subr.mxu0 0.0
      %v1141 = vand.u32 %v1035, 4294901760
      %v1142 = vsub.f32 %v1035, %v1141
      %v1143 = vand.u32 %v1142, 4294901760
      %v1144 = vsub.f32 %v1142, %v1143
      %v1145 = vand.u32 %v1144, 4294901760
      %1146 = vmatpush1.msra.mxu0 %v1145
      %1147 = vmatprep.subr.mxu0 0.0
      %v1148 = vand.u32 %v1036, 4294901760
      %v1149 = vsub.f32 %v1036, %v1148
      %v1150 = vand.u32 %v1149, 4294901760
      %v1151 = vsub.f32 %v1149, %v1150
      %v1152 = vand.u32 %v1151, 4294901760
      %1153 = vmatpush1.msra.mxu0 %v1152
      %1154 = vmatprep.subr.mxu0 0.0
      %1155 = vmatpush1.msra.mxu0 0.0
      %1156 = vmatprep.subr.mxu0 0.0
      %1157 = vmatpush1.msra.mxu0 0.0
      %1158 = vmatprep.subr.mxu0 0.0
      %1159 = vmatpush1.msra.mxu0 0.0
      %1160 = vmatprep.subr.mxu0 0.0
      %1161 = vmatpush1.msra.mxu0 0.0
      %1162 = vmatprep.subr.mxu0 0.0
      %1163 = vmatpush1.msra.mxu0 0.0
      %1164 = vmatprep.subr.mxu0 0.0
      %1165 = vmatpush1.msra.mxu0 0.0
      %1166 = vmatprep.subr.mxu0 0.0
      %1167 = vmatpush1.msra.mxu0 0.0
      %1168 = vmatprep.subr.mxu0 0.0
      %1169 = vmatpush1.msra.mxu0 0.0
      %1170 = vmatprep.subr.mxu0 0.0
      %1171 = vmatpush1.msra.mxu0 0.0
      %1172 = vmatprep.subr.mxu0 0.0
      %1173 = vmatpush1.msra.mxu0 0.0
      %1174 = vmatprep.subr.mxu0 0.0
      %1175 = vmatpush1.msra.mxu0 0.0
      %1176 = vmatprep.subr.mxu0 0.0
      %1177 = vmatpush1.msra.mxu0 0.0
      %1178 = vmatprep.subr.mxu0 0.0
      %1179 = vmatpush1.msra.mxu0 0.0
      %1180 = vmatprep.subr.mxu0 0.0
      %1181 = vmatpush1.msra.mxu0 0.0
      %1182 = vmatprep.subr.mxu0 0.0
      %1183 = vmatpush1.msra.mxu0 0.0
      %1184 = vmatprep.subr.mxu0 0.0
      %1185 = vmatpush1.msra.mxu0 0.0
      %1186 = vmatprep.subr.mxu0 0.0
      %1187 = vmatpush1.msra.mxu0 0.0
      %1188 = vmatprep.subr.mxu0 0.0
      %1189 = vmatpush1.msra.mxu0 0.0
      %1190 = vmatprep.subr.mxu0 0.0
      %1191 = vmatpush1.msra.mxu0 0.0
      %1192 = vmatprep.subr.mxu0 0.0
      %1193 = vmatpush1.msra.mxu0 0.0
      %1194 = vmatprep.subr.mxu0 0.0
      %1195 = vmatpush1.msra.mxu0 0.0
      %1196 = vmatprep.subr.mxu0 0.0
      %1197 = vmatpush1.msra.mxu0 0.0
      %1198 = vmatprep.subr.mxu0 0.0
      %1199 = vmatpush1.msra.mxu0 0.0
      %1200 = vmatprep.subr.mxu0 0.0
      %1201 = vmatpush1.msra.mxu0 0.0
      %1202 = vmatprep.subr.mxu0 0.0
      %1203 = vmatpush1.msra.mxu0 0.0
      %1204 = vmatprep.subr.mxu0 0.0
      %1205 = vmatpush1.msra.mxu0 0.0
      %1206 = vmatprep.subr.mxu0 0.0
      %1207 = vmatpush1.msra.mxu0 0.0
      %1208 = vmatprep.subr.mxu0 0.0
      %1209 = vmatpush1.msra.mxu0 0.0
      %1210 = vmatprep.mubr.f32.mxu0 0.0
      %v1211 = vand.u32 %v1045, 4294901760
      %1212 = vmatmul.mubr.f32.gmra.mrb[0].mxu0 %v1211
      %v1213 = vpop.f32.mrb[0].mxu0
      %v1214 = vadd.f32 %v1123, %v1213
      %v1215 = vpop.f32.mrb[0].mxu0
      %1216 = vdwg.mxu0
      %1217 = vmatprep.subr.mxu0 0.0
      %v1218 = vand.u32 %v1033, 4294901760
      %v1219 = vsub.f32 %v1033, %v1218
      %1220 = vmatpush1.msra.mxu0 %v1219
      %1221 = vmatprep.subr.mxu0 0.0
      %v1222 = vand.u32 %v1034, 4294901760
      %v1223 = vsub.f32 %v1034, %v1222
      %1224 = vmatpush1.msra.mxu0 %v1223
      %1225 = vmatprep.subr.mxu0 0.0
      %v1226 = vand.u32 %v1035, 4294901760
      %v1227 = vsub.f32 %v1035, %v1226
      %1228 = vmatpush1.msra.mxu0 %v1227
      %1229 = vmatprep.subr.mxu0 0.0
      %v1230 = vand.u32 %v1036, 4294901760
      %v1231 = vsub.f32 %v1036, %v1230
      %1232 = vmatpush1.msra.mxu0 %v1231
      %1233 = vmatprep.subr.mxu0 0.0
      %1234 = vmatpush1.msra.mxu0 0.0
      %1235 = vmatprep.subr.mxu0 0.0
      %1236 = vmatpush1.msra.mxu0 0.0
      %1237 = vmatprep.subr.mxu0 0.0
      %1238 = vmatpush1.msra.mxu0 0.0
      %1239 = vmatprep.subr.mxu0 0.0
      %1240 = vmatpush1.msra.mxu0 0.0
      %1241 = vmatprep.subr.mxu0 0.0
      %1242 = vmatpush1.msra.mxu0 0.0
      %1243 = vmatprep.subr.mxu0 0.0
      %1244 = vmatpush1.msra.mxu0 0.0
      %1245 = vmatprep.subr.mxu0 0.0
      %1246 = vmatpush1.msra.mxu0 0.0
      %1247 = vmatprep.subr.mxu0 0.0
      %1248 = vmatpush1.msra.mxu0 0.0
      %1249 = vmatprep.subr.mxu0 0.0
      %1250 = vmatpush1.msra.mxu0 0.0
      %1251 = vmatprep.subr.mxu0 0.0
      %1252 = vmatpush1.msra.mxu0 0.0
      %1253 = vmatprep.subr.mxu0 0.0
      %1254 = vmatpush1.msra.mxu0 0.0
      %1255 = vmatprep.subr.mxu0 0.0
      %1256 = vmatpush1.msra.mxu0 0.0
      %1257 = vmatprep.subr.mxu0 0.0
      %1258 = vmatpush1.msra.mxu0 0.0
      %1259 = vmatprep.subr.mxu0 0.0
      %1260 = vmatpush1.msra.mxu0 0.0
      %1261 = vmatprep.subr.mxu0 0.0
      %1262 = vmatpush1.msra.mxu0 0.0
      %1263 = vmatprep.subr.mxu0 0.0
      %1264 = vmatpush1.msra.mxu0 0.0
      %1265 = vmatprep.subr.mxu0 0.0
      %1266 = vmatpush1.msra.mxu0 0.0
      %1267 = vmatprep.subr.mxu0 0.0
      %1268 = vmatpush1.msra.mxu0 0.0
      %1269 = vmatprep.subr.mxu0 0.0
      %1270 = vmatpush1.msra.mxu0 0.0
      %1271 = vmatprep.subr.mxu0 0.0
      %1272 = vmatpush1.msra.mxu0 0.0
      %1273 = vmatprep.subr.mxu0 0.0
      %1274 = vmatpush1.msra.mxu0 0.0
      %1275 = vmatprep.subr.mxu0 0.0
      %1276 = vmatpush1.msra.mxu0 0.0
      %1277 = vmatprep.subr.mxu0 0.0
      %1278 = vmatpush1.msra.mxu0 0.0
      %1279 = vmatprep.subr.mxu0 0.0
      %1280 = vmatpush1.msra.mxu0 0.0
      %1281 = vmatprep.subr.mxu0 0.0
      %1282 = vmatpush1.msra.mxu0 0.0
      %1283 = vmatprep.subr.mxu0 0.0
      %1284 = vmatpush1.msra.mxu0 0.0
      %1285 = vmatprep.subr.mxu0 0.0
      %1286 = vmatpush1.msra.mxu0 0.0
      %1287 = vmatprep.subr.mxu0 0.0
      %1288 = vmatpush1.msra.mxu0 0.0
      %1289 = vmatprep.mubr.f32.mxu0 0.0
      %v1290 = vand.u32 %v1045, 4294901760
      %v1291 = vsub.f32 %v1045, %v1290
      %1292 = vmatmul.mubr.f32.gmra.mrb[0].mxu0 %v1291
      %v1293 = vpop.f32.mrb[0].mxu0
      %v1294 = vadd.f32 %v1214, %v1293
      %v1295 = vpop.f32.mrb[0].mxu0
      %1296 = vdwg.mxu0
      %1297 = vmatprep.subr.mxu0 0.0
      %v1298 = vand.u32 %v1033, 4294901760
      %1299 = vmatpush1.msra.mxu0 %v1298
      %1300 = vmatprep.subr.mxu0 0.0
      %v1301 = vand.u32 %v1034, 4294901760
      %1302 = vmatpush1.msra.mxu0 %v1301
      %1303 = vmatprep.subr.mxu0 0.0
      %v1304 = vand.u32 %v1035, 4294901760
      %1305 = vmatpush1.msra.mxu0 %v1304
      %1306 = vmatprep.subr.mxu0 0.0
      %v1307 = vand.u32 %v1036, 4294901760
      %1308 = vmatpush1.msra.mxu0 %v1307
      %1309 = vmatprep.subr.mxu0 0.0
      %1310 = vmatpush1.msra.mxu0 0.0
      %1311 = vmatprep.subr.mxu0 0.0
      %1312 = vmatpush1.msra.mxu0 0.0
      %1313 = vmatprep.subr.mxu0 0.0
      %1314 = vmatpush1.msra.mxu0 0.0
      %1315 = vmatprep.subr.mxu0 0.0
      %1316 = vmatpush1.msra.mxu0 0.0
      %1317 = vmatprep.subr.mxu0 0.0
      %1318 = vmatpush1.msra.mxu0 0.0
      %1319 = vmatprep.subr.mxu0 0.0
      %1320 = vmatpush1.msra.mxu0 0.0
      %1321 = vmatprep.subr.mxu0 0.0
      %1322 = vmatpush1.msra.mxu0 0.0
      %1323 = vmatprep.subr.mxu0 0.0
      %1324 = vmatpush1.msra.mxu0 0.0
      %1325 = vmatprep.subr.mxu0 0.0
      %1326 = vmatpush1.msra.mxu0 0.0
      %1327 = vmatprep.subr.mxu0 0.0
      %1328 = vmatpush1.msra.mxu0 0.0
      %1329 = vmatprep.subr.mxu0 0.0
      %1330 = vmatpush1.msra.mxu0 0.0
      %1331 = vmatprep.subr.mxu0 0.0
      %1332 = vmatpush1.msra.mxu0 0.0
      %1333 = vmatprep.subr.mxu0 0.0
      %1334 = vmatpush1.msra.mxu0 0.0
      %1335 = vmatprep.subr.mxu0 0.0
      %1336 = vmatpush1.msra.mxu0 0.0
      %1337 = vmatprep.subr.mxu0 0.0
      %1338 = vmatpush1.msra.mxu0 0.0
      %1339 = vmatprep.subr.mxu0 0.0
      %1340 = vmatpush1.msra.mxu0 0.0
      %1341 = vmatprep.subr.mxu0 0.0
      %1342 = vmatpush1.msra.mxu0 0.0
      %1343 = vmatprep.subr.mxu0 0.0
      %1344 = vmatpush1.msra.mxu0 0.0
      %1345 = vmatprep.subr.mxu0 0.0
      %1346 = vmatpush1.msra.mxu0 0.0
      %1347 = vmatprep.subr.mxu0 0.0
      %1348 = vmatpush1.msra.mxu0 0.0
      %1349 = vmatprep.subr.mxu0 0.0
      %1350 = vmatpush1.msra.mxu0 0.0
      %1351 = vmatprep.subr.mxu0 0.0
      %1352 = vmatpush1.msra.mxu0 0.0
      %1353 = vmatprep.subr.mxu0 0.0
      %1354 = vmatpush1.msra.mxu0 0.0
      %1355 = vmatprep.subr.mxu0 0.0
      %1356 = vmatpush1.msra.mxu0 0.0
      %1357 = vmatprep.subr.mxu0 0.0
      %1358 = vmatpush1.msra.mxu0 0.0
      %1359 = vmatprep.subr.mxu0 0.0
      %1360 = vmatpush1.msra.mxu0 0.0
      %1361 = vmatprep.subr.mxu0 0.0
      %1362 = vmatpush1.msra.mxu0 0.0
      %1363 = vmatprep.subr.mxu0 0.0
      %1364 = vmatpush1.msra.mxu0 0.0
      %1365 = vmatprep.mubr.f32.mxu0 0.0
      %v1366 = vand.u32 %v1045, 4294901760
      %v1367 = vsub.f32 %v1045, %v1366
      %v1368 = vand.u32 %v1367, 4294901760
      %1369 = vmatmul.mubr.f32.gmra.mrb[0].mxu0 %v1368
      %v1370 = vpop.f32.mrb[0].mxu0
      %v1371 = vadd.f32 %v1294, %v1370
      %v1372 = vpop.f32.mrb[0].mxu0
      %1373 = vdwg.mxu0
      %1374 = vmatprep.subr.mxu0 0.0
      %v1375 = vand.u32 %v1033, 4294901760
      %v1376 = vsub.f32 %v1033, %v1375
      %v1377 = vand.u32 %v1376, 4294901760
      %1378 = vmatpush1.msra.mxu0 %v1377
      %1379 = vmatprep.subr.mxu0 0.0
      %v1380 = vand.u32 %v1034, 4294901760
      %v1381 = vsub.f32 %v1034, %v1380
      %v1382 = vand.u32 %v1381, 4294901760
      %1383 = vmatpush1.msra.mxu0 %v1382
      %1384 = vmatprep.subr.mxu0 0.0
      %v1385 = vand.u32 %v1035, 4294901760
      %v1386 = vsub.f32 %v1035, %v1385
      %v1387 = vand.u32 %v1386, 4294901760
      %1388 = vmatpush1.msra.mxu0 %v1387
      %1389 = vmatprep.subr.mxu0 0.0
      %v1390 = vand.u32 %v1036, 4294901760
      %v1391 = vsub.f32 %v1036, %v1390
      %v1392 = vand.u32 %v1391, 4294901760
      %1393 = vmatpush1.msra.mxu0 %v1392
      %1394 = vmatprep.subr.mxu0 0.0
      %1395 = vmatpush1.msra.mxu0 0.0
      %1396 = vmatprep.subr.mxu0 0.0
      %1397 = vmatpush1.msra.mxu0 0.0
      %1398 = vmatprep.subr.mxu0 0.0
      %1399 = vmatpush1.msra.mxu0 0.0
      %1400 = vmatprep.subr.mxu0 0.0
      %1401 = vmatpush1.msra.mxu0 0.0
      %1402 = vmatprep.subr.mxu0 0.0
      %1403 = vmatpush1.msra.mxu0 0.0
      %1404 = vmatprep.subr.mxu0 0.0
      %1405 = vmatpush1.msra.mxu0 0.0
      %1406 = vmatprep.subr.mxu0 0.0
      %1407 = vmatpush1.msra.mxu0 0.0
      %1408 = vmatprep.subr.mxu0 0.0
      %1409 = vmatpush1.msra.mxu0 0.0
      %1410 = vmatprep.subr.mxu0 0.0
      %1411 = vmatpush1.msra.mxu0 0.0
      %1412 = vmatprep.subr.mxu0 0.0
      %1413 = vmatpush1.msra.mxu0 0.0
      %1414 = vmatprep.subr.mxu0 0.0
      %1415 = vmatpush1.msra.mxu0 0.0
      %1416 = vmatprep.subr.mxu0 0.0
      %1417 = vmatpush1.msra.mxu0 0.0
      %1418 = vmatprep.subr.mxu0 0.0
      %1419 = vmatpush1.msra.mxu0 0.0
      %1420 = vmatprep.subr.mxu0 0.0
      %1421 = vmatpush1.msra.mxu0 0.0
      %1422 = vmatprep.subr.mxu0 0.0
      %1423 = vmatpush1.msra.mxu0 0.0
      %1424 = vmatprep.subr.mxu0 0.0
      %1425 = vmatpush1.msra.mxu0 0.0
      %1426 = vmatprep.subr.mxu0 0.0
      %1427 = vmatpush1.msra.mxu0 0.0
      %1428 = vmatprep.subr.mxu0 0.0
      %1429 = vmatpush1.msra.mxu0 0.0
      %1430 = vmatprep.subr.mxu0 0.0
      %1431 = vmatpush1.msra.mxu0 0.0
      %1432 = vmatprep.subr.mxu0 0.0
      %1433 = vmatpush1.msra.mxu0 0.0
      %1434 = vmatprep.subr.mxu0 0.0
      %1435 = vmatpush1.msra.mxu0 0.0
      %1436 = vmatprep.subr.mxu0 0.0
      %1437 = vmatpush1.msra.mxu0 0.0
      %1438 = vmatprep.subr.mxu0 0.0
      %1439 = vmatpush1.msra.mxu0 0.0
      %1440 = vmatprep.subr.mxu0 0.0
      %1441 = vmatpush1.msra.mxu0 0.0
      %1442 = vmatprep.subr.mxu0 0.0
      %1443 = vmatpush1.msra.mxu0 0.0
      %1444 = vmatprep.subr.mxu0 0.0
      %1445 = vmatpush1.msra.mxu0 0.0
      %1446 = vmatprep.subr.mxu0 0.0
      %1447 = vmatpush1.msra.mxu0 0.0
      %1448 = vmatprep.subr.mxu0 0.0
      %1449 = vmatpush1.msra.mxu0 0.0
      %1450 = vmatprep.mubr.f32.mxu0 0.0
      %v1451 = vand.u32 %v1045, 4294901760
      %1452 = vmatmul.mubr.f32.gmra.mrb[0].mxu0 %v1451
      %v1453 = vpop.f32.mrb[0].mxu0
      %v1454 = vadd.f32 %v1371, %v1453
      %v1455 = vpop.f32.mrb[0].mxu0
      %1456 = vdwg.mxu0
      %1457 = vmatprep.subr.mxu0 0.0
      %v1458 = vand.u32 %v1033, 4294901760
      %1459 = vmatpush1.msra.mxu0 %v1458
      %1460 = vmatprep.subr.mxu0 0.0
      %v1461 = vand.u32 %v1034, 4294901760
      %1462 = vmatpush1.msra.mxu0 %v1461
      %1463 = vmatprep.subr.mxu0 0.0
      %v1464 = vand.u32 %v1035, 4294901760
      %1465 = vmatpush1.msra.mxu0 %v1464
      %1466 = vmatprep.subr.mxu0 0.0
      %v1467 = vand.u32 %v1036, 4294901760
      %1468 = vmatpush1.msra.mxu0 %v1467
      %1469 = vmatprep.subr.mxu0 0.0
      %1470 = vmatpush1.msra.mxu0 0.0
      %1471 = vmatprep.subr.mxu0 0.0
      %1472 = vmatpush1.msra.mxu0 0.0
      %1473 = vmatprep.subr.mxu0 0.0
      %1474 = vmatpush1.msra.mxu0 0.0
      %1475 = vmatprep.subr.mxu0 0.0
      %1476 = vmatpush1.msra.mxu0 0.0
      %1477 = vmatprep.subr.mxu0 0.0
      %1478 = vmatpush1.msra.mxu0 0.0
      %1479 = vmatprep.subr.mxu0 0.0
      %1480 = vmatpush1.msra.mxu0 0.0
      %1481 = vmatprep.subr.mxu0 0.0
      %1482 = vmatpush1.msra.mxu0 0.0
      %1483 = vmatprep.subr.mxu0 0.0
      %1484 = vmatpush1.msra.mxu0 0.0
      %1485 = vmatprep.subr.mxu0 0.0
      %1486 = vmatpush1.msra.mxu0 0.0
      %1487 = vmatprep.subr.mxu0 0.0
      %1488 = vmatpush1.msra.mxu0 0.0
      %1489 = vmatprep.subr.mxu0 0.0
      %1490 = vmatpush1.msra.mxu0 0.0
      %1491 = vmatprep.subr.mxu0 0.0
      %1492 = vmatpush1.msra.mxu0 0.0
      %1493 = vmatprep.subr.mxu0 0.0
      %1494 = vmatpush1.msra.mxu0 0.0
      %1495 = vmatprep.subr.mxu0 0.0
      %1496 = vmatpush1.msra.mxu0 0.0
      %1497 = vmatprep.subr.mxu0 0.0
      %1498 = vmatpush1.msra.mxu0 0.0
      %1499 = vmatprep.subr.mxu0 0.0
      %1500 = vmatpush1.msra.mxu0 0.0
      %1501 = vmatprep.subr.mxu0 0.0
      %1502 = vmatpush1.msra.mxu0 0.0
      %1503 = vmatprep.subr.mxu0 0.0
      %1504 = vmatpush1.msra.mxu0 0.0
      %1505 = vmatprep.subr.mxu0 0.0
      %1506 = vmatpush1.msra.mxu0 0.0
      %1507 = vmatprep.subr.mxu0 0.0
      %1508 = vmatpush1.msra.mxu0 0.0
      %1509 = vmatprep.subr.mxu0 0.0
      %1510 = vmatpush1.msra.mxu0 0.0
      %1511 = vmatprep.subr.mxu0 0.0
      %1512 = vmatpush1.msra.mxu0 0.0
      %1513 = vmatprep.subr.mxu0 0.0
      %1514 = vmatpush1.msra.mxu0 0.0
      %1515 = vmatprep.subr.mxu0 0.0
      %1516 = vmatpush1.msra.mxu0 0.0
      %1517 = vmatprep.subr.mxu0 0.0
      %1518 = vmatpush1.msra.mxu0 0.0
      %1519 = vmatprep.subr.mxu0 0.0
      %1520 = vmatpush1.msra.mxu0 0.0
      %1521 = vmatprep.subr.mxu0 0.0
      %1522 = vmatpush1.msra.mxu0 0.0
      %1523 = vmatprep.subr.mxu0 0.0
      %1524 = vmatpush1.msra.mxu0 0.0
      %1525 = vmatprep.mubr.f32.mxu0 0.0
      %v1526 = vand.u32 %v1045, 4294901760
      %1527 = vmatmul.mubr.f32.gmra.mrb[0].mxu0 %v1526
      %v1528 = vpop.f32.mrb[0].mxu0
      %v1529 = vadd.f32 %v1454, %v1528
      %v1530 = vpop.f32.mrb[0].mxu0
      %1531 = vdwg.mxu0
      %v1532 = vld [vmem:[%s5] sm:$0xff]
      %v1533 = vld [vmem:[%s5 + $0x8] sm:$0xff]
      %v1534 = vld [vmem:[%s6] sm:$0xff]
      %v1535 = vld [vmem:[%s6 + $0x8] sm:$0xff]
      %1537 = vset.pattern.permute.xlu0 0
      %1538 = vperm.xlu0 %1537, %v1534
      %v1539 = vpop.permute.xlu0 %1538
      %1542 = vset.pattern.permute.xlu0 0
      %1543 = vperm.xlu0 %1542, %v1535
      %v1544 = vpop.permute.xlu0 %1543
      %vm1546 = vcmask 64512
      %v1548 = vsel %vm1546, %v1532, 0
      %v1551 = vsel %vm1546, %v1533, 0
      %1553 = vmatprep.subr.mxu0 0.0
      %v1554 = vand.u32 %v1529, 4294901760
      %1555 = vmatpush1.msra.mxu0 %v1554
      %1556 = vmatprep.subr.mxu0 0.0
      %1557 = vmatpush1.msra.mxu0 0.0
      %1558 = vmatprep.subr.mxu0 0.0
      %1559 = vmatpush1.msra.mxu0 0.0
      %1560 = vmatprep.subr.mxu0 0.0
      %1561 = vmatpush1.msra.mxu0 0.0
      %1562 = vmatprep.subr.mxu0 0.0
      %1563 = vmatpush1.msra.mxu0 0.0
      %1564 = vmatprep.subr.mxu0 0.0
      %1565 = vmatpush1.msra.mxu0 0.0
      %1566 = vmatprep.subr.mxu0 0.0
      %1567 = vmatpush1.msra.mxu0 0.0
      %1568 = vmatprep.subr.mxu0 0.0
      %1569 = vmatpush1.msra.mxu0 0.0
      %1570 = vmatprep.subr.mxu0 0.0
      %1571 = vmatpush1.msra.mxu0 0.0
      %1572 = vmatprep.subr.mxu0 0.0
      %1573 = vmatpush1.msra.mxu0 0.0
      %1574 = vmatprep.subr.mxu0 0.0
      %1575 = vmatpush1.msra.mxu0 0.0
      %1576 = vmatprep.subr.mxu0 0.0
      %1577 = vmatpush1.msra.mxu0 0.0
      %1578 = vmatprep.subr.mxu0 0.0
      %1579 = vmatpush1.msra.mxu0 0.0
      %1580 = vmatprep.subr.mxu0 0.0
      %1581 = vmatpush1.msra.mxu0 0.0
      %1582 = vmatprep.subr.mxu0 0.0
      %1583 = vmatpush1.msra.mxu0 0.0
      %1584 = vmatprep.subr.mxu0 0.0
      %1585 = vmatpush1.msra.mxu0 0.0
      %1586 = vmatprep.subr.mxu0 0.0
      %1587 = vmatpush1.msra.mxu0 0.0
      %1588 = vmatprep.subr.mxu0 0.0
      %1589 = vmatpush1.msra.mxu0 0.0
      %1590 = vmatprep.subr.mxu0 0.0
      %1591 = vmatpush1.msra.mxu0 0.0
      %1592 = vmatprep.subr.mxu0 0.0
      %1593 = vmatpush1.msra.mxu0 0.0
      %1594 = vmatprep.subr.mxu0 0.0
      %1595 = vmatpush1.msra.mxu0 0.0
      %1596 = vmatprep.subr.mxu0 0.0
      %1597 = vmatpush1.msra.mxu0 0.0
      %1598 = vmatprep.subr.mxu0 0.0
      %1599 = vmatpush1.msra.mxu0 0.0
      %1600 = vmatprep.subr.mxu0 0.0
      %1601 = vmatpush1.msra.mxu0 0.0
      %1602 = vmatprep.subr.mxu0 0.0
      %1603 = vmatpush1.msra.mxu0 0.0
      %1604 = vmatprep.subr.mxu0 0.0
      %1605 = vmatpush1.msra.mxu0 0.0
      %1606 = vmatprep.subr.mxu0 0.0
      %1607 = vmatpush1.msra.mxu0 0.0
      %1608 = vmatprep.subr.mxu0 0.0
      %1609 = vmatpush1.msra.mxu0 0.0
      %1610 = vmatprep.subr.mxu0 0.0
      %1611 = vmatpush1.msra.mxu0 0.0
      %1612 = vmatprep.subr.mxu0 0.0
      %1613 = vmatpush1.msra.mxu0 0.0
      %1614 = vmatprep.subr.mxu0 0.0
      %1615 = vmatpush1.msra.mxu0 0.0
      %1616 = vmatprep.subr.mxu0 0.0
      %1617 = vmatpush1.msra.mxu0 0.0
      %1618 = vmatprep.mubr.f32.mxu0 0.0
      %v1619 = vand.u32 %v1548, 4294901760
      %v1620 = vsub.f32 %v1548, %v1619
      %v1621 = vand.u32 %v1620, 4294901760
      %v1622 = vsub.f32 %v1620, %v1621
      %v1623 = vand.u32 %v1622, 4294901760
      %1624 = vmatmul.mubr.f32.gmra.mrb[0].mxu0 %v1623
      %v1625 = vpop.f32.mrb[0].mxu0
      %v1626 = vadd.f32 %v1539, %v1625
      %v1627 = vpop.f32.mrb[0].mxu0
      %1628 = vmatprep.mubr.f32.mxu0 0.0
      %v1629 = vand.u32 %v1551, 4294901760
      %v1630 = vsub.f32 %v1551, %v1629
      %v1631 = vand.u32 %v1630, 4294901760
      %v1632 = vsub.f32 %v1630, %v1631
      %v1633 = vand.u32 %v1632, 4294901760
      %1634 = vmatmul.mubr.f32.gmra.mrb[0].mxu0 %v1633
      %v1635 = vpop.f32.mrb[0].mxu0
      %v1636 = vadd.f32 %v1544, %v1635
      %v1637 = vpop.f32.mrb[0].mxu0
      %1638 = vdwg.mxu0
      %1639 = vmatprep.subr.mxu0 0.0
      %v1640 = vand.u32 %v1529, 4294901760
      %v1641 = vsub.f32 %v1529, %v1640
      %v1642 = vand.u32 %v1641, 4294901760
      %v1643 = vsub.f32 %v1641, %v1642
      %v1644 = vand.u32 %v1643, 4294901760
      %1645 = vmatpush1.msra.mxu0 %v1644
      %1646 = vmatprep.subr.mxu0 0.0
      %1647 = vmatpush1.msra.mxu0 0.0
      %1648 = vmatprep.subr.mxu0 0.0
      %1649 = vmatpush1.msra.mxu0 0.0
      %1650 = vmatprep.subr.mxu0 0.0
      %1651 = vmatpush1.msra.mxu0 0.0
      %1652 = vmatprep.subr.mxu0 0.0
      %1653 = vmatpush1.msra.mxu0 0.0
      %1654 = vmatprep.subr.mxu0 0.0
      %1655 = vmatpush1.msra.mxu0 0.0
      %1656 = vmatprep.subr.mxu0 0.0
      %1657 = vmatpush1.msra.mxu0 0.0
      %1658 = vmatprep.subr.mxu0 0.0
      %1659 = vmatpush1.msra.mxu0 0.0
      %1660 = vmatprep.subr.mxu0 0.0
      %1661 = vmatpush1.msra.mxu0 0.0
      %1662 = vmatprep.subr.mxu0 0.0
      %1663 = vmatpush1.msra.mxu0 0.0
      %1664 = vmatprep.subr.mxu0 0.0
      %1665 = vmatpush1.msra.mxu0 0.0
      %1666 = vmatprep.subr.mxu0 0.0
      %1667 = vmatpush1.msra.mxu0 0.0
      %1668 = vmatprep.subr.mxu0 0.0
      %1669 = vmatpush1.msra.mxu0 0.0
      %1670 = vmatprep.subr.mxu0 0.0
      %1671 = vmatpush1.msra.mxu0 0.0
      %1672 = vmatprep.subr.mxu0 0.0
      %1673 = vmatpush1.msra.mxu0 0.0
      %1674 = vmatprep.subr.mxu0 0.0
      %1675 = vmatpush1.msra.mxu0 0.0
      %1676 = vmatprep.subr.mxu0 0.0
      %1677 = vmatpush1.msra.mxu0 0.0
      %1678 = vmatprep.subr.mxu0 0.0
      %1679 = vmatpush1.msra.mxu0 0.0
      %1680 = vmatprep.subr.mxu0 0.0
      %1681 = vmatpush1.msra.mxu0 0.0
      %1682 = vmatprep.subr.mxu0 0.0
      %1683 = vmatpush1.msra.mxu0 0.0
      %1684 = vmatprep.subr.mxu0 0.0
      %1685 = vmatpush1.msra.mxu0 0.0
      %1686 = vmatprep.subr.mxu0 0.0
      %1687 = vmatpush1.msra.mxu0 0.0
      %1688 = vmatprep.subr.mxu0 0.0
      %1689 = vmatpush1.msra.mxu0 0.0
      %1690 = vmatprep.subr.mxu0 0.0
      %1691 = vmatpush1.msra.mxu0 0.0
      %1692 = vmatprep.subr.mxu0 0.0
      %1693 = vmatpush1.msra.mxu0 0.0
      %1694 = vmatprep.subr.mxu0 0.0
      %1695 = vmatpush1.msra.mxu0 0.0
      %1696 = vmatprep.subr.mxu0 0.0
      %1697 = vmatpush1.msra.mxu0 0.0
      %1698 = vmatprep.subr.mxu0 0.0
      %1699 = vmatpush1.msra.mxu0 0.0
      %1700 = vmatprep.subr.mxu0 0.0
      %1701 = vmatpush1.msra.mxu0 0.0
      %1702 = vmatprep.subr.mxu0 0.0
      %1703 = vmatpush1.msra.mxu0 0.0
      %1704 = vmatprep.subr.mxu0 0.0
      %1705 = vmatpush1.msra.mxu0 0.0
      %1706 = vmatprep.subr.mxu0 0.0
      %1707 = vmatpush1.msra.mxu0 0.0
      %1708 = vmatprep.mubr.f32.mxu0 0.0
      %v1709 = vand.u32 %v1548, 4294901760
      %1710 = vmatmul.mubr.f32.gmra.mrb[0].mxu0 %v1709
      %v1711 = vpop.f32.mrb[0].mxu0
      %v1712 = vadd.f32 %v1626, %v1711
      %v1713 = vpop.f32.mrb[0].mxu0
      %1714 = vmatprep.mubr.f32.mxu0 0.0
      %v1715 = vand.u32 %v1551, 4294901760
      %1716 = vmatmul.mubr.f32.gmra.mrb[0].mxu0 %v1715
      %v1717 = vpop.f32.mrb[0].mxu0
      %v1718 = vadd.f32 %v1636, %v1717
      %v1719 = vpop.f32.mrb[0].mxu0
      %1720 = vdwg.mxu0
      %1721 = vmatprep.subr.mxu0 0.0
      %v1722 = vand.u32 %v1529, 4294901760
      %v1723 = vsub.f32 %v1529, %v1722
      %1724 = vmatpush1.msra.mxu0 %v1723
      %1725 = vmatprep.subr.mxu0 0.0
      %1726 = vmatpush1.msra.mxu0 0.0
      %1727 = vmatprep.subr.mxu0 0.0
      %1728 = vmatpush1.msra.mxu0 0.0
      %1729 = vmatprep.subr.mxu0 0.0
      %1730 = vmatpush1.msra.mxu0 0.0
      %1731 = vmatprep.subr.mxu0 0.0
      %1732 = vmatpush1.msra.mxu0 0.0
      %1733 = vmatprep.subr.mxu0 0.0
      %1734 = vmatpush1.msra.mxu0 0.0
      %1735 = vmatprep.subr.mxu0 0.0
      %1736 = vmatpush1.msra.mxu0 0.0
      %1737 = vmatprep.subr.mxu0 0.0
      %1738 = vmatpush1.msra.mxu0 0.0
      %1739 = vmatprep.subr.mxu0 0.0
      %1740 = vmatpush1.msra.mxu0 0.0
      %1741 = vmatprep.subr.mxu0 0.0
      %1742 = vmatpush1.msra.mxu0 0.0
      %1743 = vmatprep.subr.mxu0 0.0
      %1744 = vmatpush1.msra.mxu0 0.0
      %1745 = vmatprep.subr.mxu0 0.0
      %1746 = vmatpush1.msra.mxu0 0.0
      %1747 = vmatprep.subr.mxu0 0.0
      %1748 = vmatpush1.msra.mxu0 0.0
      %1749 = vmatprep.subr.mxu0 0.0
      %1750 = vmatpush1.msra.mxu0 0.0
      %1751 = vmatprep.subr.mxu0 0.0
      %1752 = vmatpush1.msra.mxu0 0.0
      %1753 = vmatprep.subr.mxu0 0.0
      %1754 = vmatpush1.msra.mxu0 0.0
      %1755 = vmatprep.subr.mxu0 0.0
      %1756 = vmatpush1.msra.mxu0 0.0
      %1757 = vmatprep.subr.mxu0 0.0
      %1758 = vmatpush1.msra.mxu0 0.0
      %1759 = vmatprep.subr.mxu0 0.0
      %1760 = vmatpush1.msra.mxu0 0.0
      %1761 = vmatprep.subr.mxu0 0.0
      %1762 = vmatpush1.msra.mxu0 0.0
      %1763 = vmatprep.subr.mxu0 0.0
      %1764 = vmatpush1.msra.mxu0 0.0
      %1765 = vmatprep.subr.mxu0 0.0
      %1766 = vmatpush1.msra.mxu0 0.0
      %1767 = vmatprep.subr.mxu0 0.0
      %1768 = vmatpush1.msra.mxu0 0.0
      %1769 = vmatprep.subr.mxu0 0.0
      %1770 = vmatpush1.msra.mxu0 0.0
      %1771 = vmatprep.subr.mxu0 0.0
      %1772 = vmatpush1.msra.mxu0 0.0
      %1773 = vmatprep.subr.mxu0 0.0
      %1774 = vmatpush1.msra.mxu0 0.0
      %1775 = vmatprep.subr.mxu0 0.0
      %1776 = vmatpush1.msra.mxu0 0.0
      %1777 = vmatprep.subr.mxu0 0.0
      %1778 = vmatpush1.msra.mxu0 0.0
      %1779 = vmatprep.subr.mxu0 0.0
      %1780 = vmatpush1.msra.mxu0 0.0
      %1781 = vmatprep.subr.mxu0 0.0
      %1782 = vmatpush1.msra.mxu0 0.0
      %1783 = vmatprep.subr.mxu0 0.0
      %1784 = vmatpush1.msra.mxu0 0.0
      %1785 = vmatprep.subr.mxu0 0.0
      %1786 = vmatpush1.msra.mxu0 0.0
      %1787 = vmatprep.mubr.f32.mxu0 0.0
      %v1788 = vand.u32 %v1548, 4294901760
      %v1789 = vsub.f32 %v1548, %v1788
      %1790 = vmatmul.mubr.f32.gmra.mrb[0].mxu0 %v1789
      %v1791 = vpop.f32.mrb[0].mxu0
      %v1792 = vadd.f32 %v1712, %v1791
      %v1793 = vpop.f32.mrb[0].mxu0
      %1794 = vmatprep.mubr.f32.mxu0 0.0
      %v1795 = vand.u32 %v1551, 4294901760
      %v1796 = vsub.f32 %v1551, %v1795
      %1797 = vmatmul.mubr.f32.gmra.mrb[0].mxu0 %v1796
      %v1798 = vpop.f32.mrb[0].mxu0
      %v1799 = vadd.f32 %v1718, %v1798
      %v1800 = vpop.f32.mrb[0].mxu0
      %1801 = vdwg.mxu0
      %1802 = vmatprep.subr.mxu0 0.0
      %v1803 = vand.u32 %v1529, 4294901760
      %1804 = vmatpush1.msra.mxu0 %v1803
      %1805 = vmatprep.subr.mxu0 0.0
      %1806 = vmatpush1.msra.mxu0 0.0
      %1807 = vmatprep.subr.mxu0 0.0
      %1808 = vmatpush1.msra.mxu0 0.0
      %1809 = vmatprep.subr.mxu0 0.0
      %1810 = vmatpush1.msra.mxu0 0.0
      %1811 = vmatprep.subr.mxu0 0.0
      %1812 = vmatpush1.msra.mxu0 0.0
      %1813 = vmatprep.subr.mxu0 0.0
      %1814 = vmatpush1.msra.mxu0 0.0
      %1815 = vmatprep.subr.mxu0 0.0
      %1816 = vmatpush1.msra.mxu0 0.0
      %1817 = vmatprep.subr.mxu0 0.0
      %1818 = vmatpush1.msra.mxu0 0.0
      %1819 = vmatprep.subr.mxu0 0.0
      %1820 = vmatpush1.msra.mxu0 0.0
      %1821 = vmatprep.subr.mxu0 0.0
      %1822 = vmatpush1.msra.mxu0 0.0
      %1823 = vmatprep.subr.mxu0 0.0
      %1824 = vmatpush1.msra.mxu0 0.0
      %1825 = vmatprep.subr.mxu0 0.0
      %1826 = vmatpush1.msra.mxu0 0.0
      %1827 = vmatprep.subr.mxu0 0.0
      %1828 = vmatpush1.msra.mxu0 0.0
      %1829 = vmatprep.subr.mxu0 0.0
      %1830 = vmatpush1.msra.mxu0 0.0
      %1831 = vmatprep.subr.mxu0 0.0
      %1832 = vmatpush1.msra.mxu0 0.0
      %1833 = vmatprep.subr.mxu0 0.0
      %1834 = vmatpush1.msra.mxu0 0.0
      %1835 = vmatprep.subr.mxu0 0.0
      %1836 = vmatpush1.msra.mxu0 0.0
      %1837 = vmatprep.subr.mxu0 0.0
      %1838 = vmatpush1.msra.mxu0 0.0
      %1839 = vmatprep.subr.mxu0 0.0
      %1840 = vmatpush1.msra.mxu0 0.0
      %1841 = vmatprep.subr.mxu0 0.0
      %1842 = vmatpush1.msra.mxu0 0.0
      %1843 = vmatprep.subr.mxu0 0.0
      %1844 = vmatpush1.msra.mxu0 0.0
      %1845 = vmatprep.subr.mxu0 0.0
      %1846 = vmatpush1.msra.mxu0 0.0
      %1847 = vmatprep.subr.mxu0 0.0
      %1848 = vmatpush1.msra.mxu0 0.0
      %1849 = vmatprep.subr.mxu0 0.0
      %1850 = vmatpush1.msra.mxu0 0.0
      %1851 = vmatprep.subr.mxu0 0.0
      %1852 = vmatpush1.msra.mxu0 0.0
      %1853 = vmatprep.subr.mxu0 0.0
      %1854 = vmatpush1.msra.mxu0 0.0
      %1855 = vmatprep.subr.mxu0 0.0
      %1856 = vmatpush1.msra.mxu0 0.0
      %1857 = vmatprep.subr.mxu0 0.0
      %1858 = vmatpush1.msra.mxu0 0.0
      %1859 = vmatprep.subr.mxu0 0.0
      %1860 = vmatpush1.msra.mxu0 0.0
      %1861 = vmatprep.subr.mxu0 0.0
      %1862 = vmatpush1.msra.mxu0 0.0
      %1863 = vmatprep.subr.mxu0 0.0
      %1864 = vmatpush1.msra.mxu0 0.0
      %1865 = vmatprep.subr.mxu0 0.0
      %1866 = vmatpush1.msra.mxu0 0.0
      %1867 = vmatprep.mubr.f32.mxu0 0.0
      %v1868 = vand.u32 %v1548, 4294901760
      %v1869 = vsub.f32 %v1548, %v1868
      %v1870 = vand.u32 %v1869, 4294901760
      %1871 = vmatmul.mubr.f32.gmra.mrb[0].mxu0 %v1870
      %v1872 = vpop.f32.mrb[0].mxu0
      %v1873 = vadd.f32 %v1792, %v1872
      %v1874 = vpop.f32.mrb[0].mxu0
      %1875 = vmatprep.mubr.f32.mxu0 0.0
      %v1876 = vand.u32 %v1551, 4294901760
      %v1877 = vsub.f32 %v1551, %v1876
      %v1878 = vand.u32 %v1877, 4294901760
      %1879 = vmatmul.mubr.f32.gmra.mrb[0].mxu0 %v1878
      %v1880 = vpop.f32.mrb[0].mxu0
      %v1881 = vadd.f32 %v1799, %v1880
      %v1882 = vpop.f32.mrb[0].mxu0
      %1883 = vdwg.mxu0
      %1884 = vmatprep.subr.mxu0 0.0
      %v1885 = vand.u32 %v1529, 4294901760
      %v1886 = vsub.f32 %v1529, %v1885
      %v1887 = vand.u32 %v1886, 4294901760
      %1888 = vmatpush1.msra.mxu0 %v1887
      %1889 = vmatprep.subr.mxu0 0.0
      %1890 = vmatpush1.msra.mxu0 0.0
      %1891 = vmatprep.subr.mxu0 0.0
      %1892 = vmatpush1.msra.mxu0 0.0
      %1893 = vmatprep.subr.mxu0 0.0
      %1894 = vmatpush1.msra.mxu0 0.0
      %1895 = vmatprep.subr.mxu0 0.0
      %1896 = vmatpush1.msra.mxu0 0.0
      %1897 = vmatprep.subr.mxu0 0.0
      %1898 = vmatpush1.msra.mxu0 0.0
      %1899 = vmatprep.subr.mxu0 0.0
      %1900 = vmatpush1.msra.mxu0 0.0
      %1901 = vmatprep.subr.mxu0 0.0
      %1902 = vmatpush1.msra.mxu0 0.0
      %1903 = vmatprep.subr.mxu0 0.0
      %1904 = vmatpush1.msra.mxu0 0.0
      %1905 = vmatprep.subr.mxu0 0.0
      %1906 = vmatpush1.msra.mxu0 0.0
      %1907 = vmatprep.subr.mxu0 0.0
      %1908 = vmatpush1.msra.mxu0 0.0
      %1909 = vmatprep.subr.mxu0 0.0
      %1910 = vmatpush1.msra.mxu0 0.0
      %1911 = vmatprep.subr.mxu0 0.0
      %1912 = vmatpush1.msra.mxu0 0.0
      %1913 = vmatprep.subr.mxu0 0.0
      %1914 = vmatpush1.msra.mxu0 0.0
      %1915 = vmatprep.subr.mxu0 0.0
      %1916 = vmatpush1.msra.mxu0 0.0
      %1917 = vmatprep.subr.mxu0 0.0
      %1918 = vmatpush1.msra.mxu0 0.0
      %1919 = vmatprep.subr.mxu0 0.0
      %1920 = vmatpush1.msra.mxu0 0.0
      %1921 = vmatprep.subr.mxu0 0.0
      %1922 = vmatpush1.msra.mxu0 0.0
      %1923 = vmatprep.subr.mxu0 0.0
      %1924 = vmatpush1.msra.mxu0 0.0
      %1925 = vmatprep.subr.mxu0 0.0
      %1926 = vmatpush1.msra.mxu0 0.0
      %1927 = vmatprep.subr.mxu0 0.0
      %1928 = vmatpush1.msra.mxu0 0.0
      %1929 = vmatprep.subr.mxu0 0.0
      %1930 = vmatpush1.msra.mxu0 0.0
      %1931 = vmatprep.subr.mxu0 0.0
      %1932 = vmatpush1.msra.mxu0 0.0
      %1933 = vmatprep.subr.mxu0 0.0
      %1934 = vmatpush1.msra.mxu0 0.0
      %1935 = vmatprep.subr.mxu0 0.0
      %1936 = vmatpush1.msra.mxu0 0.0
      %1937 = vmatprep.subr.mxu0 0.0
      %1938 = vmatpush1.msra.mxu0 0.0
      %1939 = vmatprep.subr.mxu0 0.0
      %1940 = vmatpush1.msra.mxu0 0.0
      %1941 = vmatprep.subr.mxu0 0.0
      %1942 = vmatpush1.msra.mxu0 0.0
      %1943 = vmatprep.subr.mxu0 0.0
      %1944 = vmatpush1.msra.mxu0 0.0
      %1945 = vmatprep.subr.mxu0 0.0
      %1946 = vmatpush1.msra.mxu0 0.0
      %1947 = vmatprep.subr.mxu0 0.0
      %1948 = vmatpush1.msra.mxu0 0.0
      %1949 = vmatprep.subr.mxu0 0.0
      %1950 = vmatpush1.msra.mxu0 0.0
      %1951 = vmatprep.mubr.f32.mxu0 0.0
      %v1952 = vand.u32 %v1548, 4294901760
      %1953 = vmatmul.mubr.f32.gmra.mrb[0].mxu0 %v1952
      %v1954 = vpop.f32.mrb[0].mxu0
      %v1955 = vadd.f32 %v1873, %v1954
      %v1956 = vpop.f32.mrb[0].mxu0
      %1957 = vmatprep.mubr.f32.mxu0 0.0
      %v1958 = vand.u32 %v1551, 4294901760
      %1959 = vmatmul.mubr.f32.gmra.mrb[0].mxu0 %v1958
      %v1960 = vpop.f32.mrb[0].mxu0
      %v1961 = vadd.f32 %v1881, %v1960
      %v1962 = vpop.f32.mrb[0].mxu0
      %1963 = vdwg.mxu0
      %1964 = vmatprep.subr.mxu0 0.0
      %v1965 = vand.u32 %v1529, 4294901760
      %1966 = vmatpush1.msra.mxu0 %v1965
      %1967 = vmatprep.subr.mxu0 0.0
      %1968 = vmatpush1.msra.mxu0 0.0
      %1969 = vmatprep.subr.mxu0 0.0
      %1970 = vmatpush1.msra.mxu0 0.0
      %1971 = vmatprep.subr.mxu0 0.0
      %1972 = vmatpush1.msra.mxu0 0.0
      %1973 = vmatprep.subr.mxu0 0.0
      %1974 = vmatpush1.msra.mxu0 0.0
      %1975 = vmatprep.subr.mxu0 0.0
      %1976 = vmatpush1.msra.mxu0 0.0
      %1977 = vmatprep.subr.mxu0 0.0
      %1978 = vmatpush1.msra.mxu0 0.0
      %1979 = vmatprep.subr.mxu0 0.0
      %1980 = vmatpush1.msra.mxu0 0.0
      %1981 = vmatprep.subr.mxu0 0.0
      %1982 = vmatpush1.msra.mxu0 0.0
      %1983 = vmatprep.subr.mxu0 0.0
      %1984 = vmatpush1.msra.mxu0 0.0
      %1985 = vmatprep.subr.mxu0 0.0
      %1986 = vmatpush1.msra.mxu0 0.0
      %1987 = vmatprep.subr.mxu0 0.0
      %1988 = vmatpush1.msra.mxu0 0.0
      %1989 = vmatprep.subr.mxu0 0.0
      %1990 = vmatpush1.msra.mxu0 0.0
      %1991 = vmatprep.subr.mxu0 0.0
      %1992 = vmatpush1.msra.mxu0 0.0
      %1993 = vmatprep.subr.mxu0 0.0
      %1994 = vmatpush1.msra.mxu0 0.0
      %1995 = vmatprep.subr.mxu0 0.0
      %1996 = vmatpush1.msra.mxu0 0.0
      %1997 = vmatprep.subr.mxu0 0.0
      %1998 = vmatpush1.msra.mxu0 0.0
      %1999 = vmatprep.subr.mxu0 0.0
      %2000 = vmatpush1.msra.mxu0 0.0
      %2001 = vmatprep.subr.mxu0 0.0
      %2002 = vmatpush1.msra.mxu0 0.0
      %2003 = vmatprep.subr.mxu0 0.0
      %2004 = vmatpush1.msra.mxu0 0.0
      %2005 = vmatprep.subr.mxu0 0.0
      %2006 = vmatpush1.msra.mxu0 0.0
      %2007 = vmatprep.subr.mxu0 0.0
      %2008 = vmatpush1.msra.mxu0 0.0
      %2009 = vmatprep.subr.mxu0 0.0
      %2010 = vmatpush1.msra.mxu0 0.0
      %2011 = vmatprep.subr.mxu0 0.0
      %2012 = vmatpush1.msra.mxu0 0.0
      %2013 = vmatprep.subr.mxu0 0.0
      %2014 = vmatpush1.msra.mxu0 0.0
      %2015 = vmatprep.subr.mxu0 0.0
      %2016 = vmatpush1.msra.mxu0 0.0
      %2017 = vmatprep.subr.mxu0 0.0
      %2018 = vmatpush1.msra.mxu0 0.0
      %2019 = vmatprep.subr.mxu0 0.0
      %2020 = vmatpush1.msra.mxu0 0.0
      %2021 = vmatprep.subr.mxu0 0.0
      %2022 = vmatpush1.msra.mxu0 0.0
      %2023 = vmatprep.subr.mxu0 0.0
      %2024 = vmatpush1.msra.mxu0 0.0
      %2025 = vmatprep.subr.mxu0 0.0
      %2026 = vmatpush1.msra.mxu0 0.0
      %2027 = vmatprep.subr.mxu0 0.0
      %2028 = vmatpush1.msra.mxu0 0.0
      %2029 = vmatprep.mubr.f32.mxu0 0.0
      %v2030 = vand.u32 %v1548, 4294901760
      %2031 = vmatmul.mubr.f32.gmra.mrb[0].mxu0 %v2030
      %v2032 = vpop.f32.mrb[0].mxu0
      %v2033 = vadd.f32 %v1955, %v2032
      %v2034 = vpop.f32.mrb[0].mxu0
      %2035 = vmatprep.mubr.f32.mxu0 0.0
      %v2036 = vand.u32 %v1551, 4294901760
      %2037 = vmatmul.mubr.f32.gmra.mrb[0].mxu0 %v2036
      %v2038 = vpop.f32.mrb[0].mxu0
      %v2039 = vadd.f32 %v1961, %v2038
      %v2040 = vpop.f32.mrb[0].mxu0
      %2041 = vdwg.mxu0
      %v2042 = vmul.f32 %v2033, 0.5
      %v2043 = vmul.f32 %v2039, 0.5
      %v2044 = vmul.f32 %v2033, 0.70710677
      %v2045 = vmul.f32 %v2039, 0.70710677
      %v2046 = verf.f32.pop %v2044
      %v2047 = verf.f32.pop %v2045
      %v2048 = vadd.f32 %v2046, 1.0
      %v2049 = vadd.f32 %v2047, 1.0
      %v2050 = vmul.f32 %v2042, %v2048
      %v2051 = vmul.f32 %v2043, %v2049
      %v2052 = vld [vmem:[%s7] sm:$0xff]
      %vm2053 = vcmask 130048
      %v2055 = vsel %vm2053, %v2052, 0
      %2057 = vmatprep.subr.mxu0 0.0
      %v2058 = vand.u32 %v2050, 4294901760
      %2059 = vmatpush1.msra.mxu0 %v2058
      %2060 = vmatprep.subr.mxu0 0.0
      %v2061 = vand.u32 %v2051, 4294901760
      %2062 = vmatpush1.msra.mxu0 %v2061
      %2063 = vmatprep.subr.mxu0 0.0
      %2064 = vmatpush1.msra.mxu0 0.0
      %2065 = vmatprep.subr.mxu0 0.0
      %2066 = vmatpush1.msra.mxu0 0.0
      %2067 = vmatprep.subr.mxu0 0.0
      %2068 = vmatpush1.msra.mxu0 0.0
      %2069 = vmatprep.subr.mxu0 0.0
      %2070 = vmatpush1.msra.mxu0 0.0
      %2071 = vmatprep.subr.mxu0 0.0
      %2072 = vmatpush1.msra.mxu0 0.0
      %2073 = vmatprep.subr.mxu0 0.0
      %2074 = vmatpush1.msra.mxu0 0.0
      %2075 = vmatprep.subr.mxu0 0.0
      %2076 = vmatpush1.msra.mxu0 0.0
      %2077 = vmatprep.subr.mxu0 0.0
      %2078 = vmatpush1.msra.mxu0 0.0
      %2079 = vmatprep.subr.mxu0 0.0
      %2080 = vmatpush1.msra.mxu0 0.0
      %2081 = vmatprep.subr.mxu0 0.0
      %2082 = vmatpush1.msra.mxu0 0.0
      %2083 = vmatprep.subr.mxu0 0.0
      %2084 = vmatpush1.msra.mxu0 0.0
      %2085 = vmatprep.subr.mxu0 0.0
      %2086 = vmatpush1.msra.mxu0 0.0
      %2087 = vmatprep.subr.mxu0 0.0
      %2088 = vmatpush1.msra.mxu0 0.0
      %2089 = vmatprep.subr.mxu0 0.0
      %2090 = vmatpush1.msra.mxu0 0.0
      %2091 = vmatprep.subr.mxu0 0.0
      %2092 = vmatpush1.msra.mxu0 0.0
      %2093 = vmatprep.subr.mxu0 0.0
      %2094 = vmatpush1.msra.mxu0 0.0
      %2095 = vmatprep.subr.mxu0 0.0
      %2096 = vmatpush1.msra.mxu0 0.0
      %2097 = vmatprep.subr.mxu0 0.0
      %2098 = vmatpush1.msra.mxu0 0.0
      %2099 = vmatprep.subr.mxu0 0.0
      %2100 = vmatpush1.msra.mxu0 0.0
      %2101 = vmatprep.subr.mxu0 0.0
      %2102 = vmatpush1.msra.mxu0 0.0
      %2103 = vmatprep.subr.mxu0 0.0
      %2104 = vmatpush1.msra.mxu0 0.0
      %2105 = vmatprep.subr.mxu0 0.0
      %2106 = vmatpush1.msra.mxu0 0.0
      %2107 = vmatprep.subr.mxu0 0.0
      %2108 = vmatpush1.msra.mxu0 0.0
      %2109 = vmatprep.subr.mxu0 0.0
      %2110 = vmatpush1.msra.mxu0 0.0
      %2111 = vmatprep.subr.mxu0 0.0
      %2112 = vmatpush1.msra.mxu0 0.0
      %2113 = vmatprep.subr.mxu0 0.0
      %2114 = vmatpush1.msra.mxu0 0.0
      %2115 = vmatprep.subr.mxu0 0.0
      %2116 = vmatpush1.msra.mxu0 0.0
      %2117 = vmatprep.subr.mxu0 0.0
      %2118 = vmatpush1.msra.mxu0 0.0
      %2119 = vmatprep.subr.mxu0 0.0
      %2120 = vmatpush1.msra.mxu0 0.0
      %2121 = vmatprep.subr.mxu0 0.0
      %2122 = vmatpush1.msra.mxu0 0.0
      %2123 = vmatprep.mubr.f32.mxu0 0.0
      %v2124 = vand.u32 %v2055, 4294901760
      %v2125 = vsub.f32 %v2055, %v2124
      %v2126 = vand.u32 %v2125, 4294901760
      %v2127 = vsub.f32 %v2125, %v2126
      %v2128 = vand.u32 %v2127, 4294901760
      %2129 = vmatmul.mubr.f32.gmra.mrb[0].mxu0 %v2128
      %v2130 = vpop.f32.mrb[0].mxu0
      %v2131 = vadd.f32 0.0, %v2130
      %v2132 = vpop.f32.mrb[0].mxu0
      %2133 = vdwg.mxu0
      %2134 = vmatprep.subr.mxu0 0.0
      %v2135 = vand.u32 %v2050, 4294901760
      %v2136 = vsub.f32 %v2050, %v2135
      %v2137 = vand.u32 %v2136, 4294901760
      %v2138 = vsub.f32 %v2136, %v2137
      %v2139 = vand.u32 %v2138, 4294901760
      %2140 = vmatpush1.msra.mxu0 %v2139
      %2141 = vmatprep.subr.mxu0 0.0
      %v2142 = vand.u32 %v2051, 4294901760
      %v2143 = vsub.f32 %v2051, %v2142
      %v2144 = vand.u32 %v2143, 4294901760
      %v2145 = vsub.f32 %v2143, %v2144
      %v2146 = vand.u32 %v2145, 4294901760
      %2147 = vmatpush1.msra.mxu0 %v2146
      %2148 = vmatprep.subr.mxu0 0.0
      %2149 = vmatpush1.msra.mxu0 0.0
      %2150 = vmatprep.subr.mxu0 0.0
      %2151 = vmatpush1.msra.mxu0 0.0
      %2152 = vmatprep.subr.mxu0 0.0
      %2153 = vmatpush1.msra.mxu0 0.0
      %2154 = vmatprep.subr.mxu0 0.0
      %2155 = vmatpush1.msra.mxu0 0.0
      %2156 = vmatprep.subr.mxu0 0.0
      %2157 = vmatpush1.msra.mxu0 0.0
      %2158 = vmatprep.subr.mxu0 0.0
      %2159 = vmatpush1.msra.mxu0 0.0
      %2160 = vmatprep.subr.mxu0 0.0
      %2161 = vmatpush1.msra.mxu0 0.0
      %2162 = vmatprep.subr.mxu0 0.0
      %2163 = vmatpush1.msra.mxu0 0.0
      %2164 = vmatprep.subr.mxu0 0.0
      %2165 = vmatpush1.msra.mxu0 0.0
      %2166 = vmatprep.subr.mxu0 0.0
      %2167 = vmatpush1.msra.mxu0 0.0
      %2168 = vmatprep.subr.mxu0 0.0
      %2169 = vmatpush1.msra.mxu0 0.0
      %2170 = vmatprep.subr.mxu0 0.0
      %2171 = vmatpush1.msra.mxu0 0.0
      %2172 = vmatprep.subr.mxu0 0.0
      %2173 = vmatpush1.msra.mxu0 0.0
      %2174 = vmatprep.subr.mxu0 0.0
      %2175 = vmatpush1.msra.mxu0 0.0
      %2176 = vmatprep.subr.mxu0 0.0
      %2177 = vmatpush1.msra.mxu0 0.0
      %2178 = vmatprep.subr.mxu0 0.0
      %2179 = vmatpush1.msra.mxu0 0.0
      %2180 = vmatprep.subr.mxu0 0.0
      %2181 = vmatpush1.msra.mxu0 0.0
      %2182 = vmatprep.subr.mxu0 0.0
      %2183 = vmatpush1.msra.mxu0 0.0
      %2184 = vmatprep.subr.mxu0 0.0
      %2185 = vmatpush1.msra.mxu0 0.0
      %2186 = vmatprep.subr.mxu0 0.0
      %2187 = vmatpush1.msra.mxu0 0.0
      %2188 = vmatprep.subr.mxu0 0.0
      %2189 = vmatpush1.msra.mxu0 0.0
      %2190 = vmatprep.subr.mxu0 0.0
      %2191 = vmatpush1.msra.mxu0 0.0
      %2192 = vmatprep.subr.mxu0 0.0
      %2193 = vmatpush1.msra.mxu0 0.0
      %2194 = vmatprep.subr.mxu0 0.0
      %2195 = vmatpush1.msra.mxu0 0.0
      %2196 = vmatprep.subr.mxu0 0.0
      %2197 = vmatpush1.msra.mxu0 0.0
      %2198 = vmatprep.subr.mxu0 0.0
      %2199 = vmatpush1.msra.mxu0 0.0
      %2200 = vmatprep.subr.mxu0 0.0
      %2201 = vmatpush1.msra.mxu0 0.0
      %2202 = vmatprep.subr.mxu0 0.0
      %2203 = vmatpush1.msra.mxu0 0.0
      %2204 = vmatprep.subr.mxu0 0.0
      %2205 = vmatpush1.msra.mxu0 0.0
      %2206 = vmatprep.subr.mxu0 0.0
      %2207 = vmatpush1.msra.mxu0 0.0
      %2208 = vmatprep.mubr.f32.mxu0 0.0
      %v2209 = vand.u32 %v2055, 4294901760
      %2210 = vmatmul.mubr.f32.gmra.mrb[0].mxu0 %v2209
      %v2211 = vpop.f32.mrb[0].mxu0
      %v2212 = vadd.f32 %v2131, %v2211
      %v2213 = vpop.f32.mrb[0].mxu0
      %2214 = vdwg.mxu0
      %2215 = vmatprep.subr.mxu0 0.0
      %v2216 = vand.u32 %v2050, 4294901760
      %v2217 = vsub.f32 %v2050, %v2216
      %2218 = vmatpush1.msra.mxu0 %v2217
      %2219 = vmatprep.subr.mxu0 0.0
      %v2220 = vand.u32 %v2051, 4294901760
      %v2221 = vsub.f32 %v2051, %v2220
      %2222 = vmatpush1.msra.mxu0 %v2221
      %2223 = vmatprep.subr.mxu0 0.0
      %2224 = vmatpush1.msra.mxu0 0.0
      %2225 = vmatprep.subr.mxu0 0.0
      %2226 = vmatpush1.msra.mxu0 0.0
      %2227 = vmatprep.subr.mxu0 0.0
      %2228 = vmatpush1.msra.mxu0 0.0
      %2229 = vmatprep.subr.mxu0 0.0
      %2230 = vmatpush1.msra.mxu0 0.0
      %2231 = vmatprep.subr.mxu0 0.0
      %2232 = vmatpush1.msra.mxu0 0.0
      %2233 = vmatprep.subr.mxu0 0.0
      %2234 = vmatpush1.msra.mxu0 0.0
      %2235 = vmatprep.subr.mxu0 0.0
      %2236 = vmatpush1.msra.mxu0 0.0
      %2237 = vmatprep.subr.mxu0 0.0
      %2238 = vmatpush1.msra.mxu0 0.0
      %2239 = vmatprep.subr.mxu0 0.0
      %2240 = vmatpush1.msra.mxu0 0.0
      %2241 = vmatprep.subr.mxu0 0.0
      %2242 = vmatpush1.msra.mxu0 0.0
      %2243 = vmatprep.subr.mxu0 0.0
      %2244 = vmatpush1.msra.mxu0 0.0
      %2245 = vmatprep.subr.mxu0 0.0
      %2246 = vmatpush1.msra.mxu0 0.0
      %2247 = vmatprep.subr.mxu0 0.0
      %2248 = vmatpush1.msra.mxu0 0.0
      %2249 = vmatprep.subr.mxu0 0.0
      %2250 = vmatpush1.msra.mxu0 0.0
      %2251 = vmatprep.subr.mxu0 0.0
      %2252 = vmatpush1.msra.mxu0 0.0
      %2253 = vmatprep.subr.mxu0 0.0
      %2254 = vmatpush1.msra.mxu0 0.0
      %2255 = vmatprep.subr.mxu0 0.0
      %2256 = vmatpush1.msra.mxu0 0.0
      %2257 = vmatprep.subr.mxu0 0.0
      %2258 = vmatpush1.msra.mxu0 0.0
      %2259 = vmatprep.subr.mxu0 0.0
      %2260 = vmatpush1.msra.mxu0 0.0
      %2261 = vmatprep.subr.mxu0 0.0
      %2262 = vmatpush1.msra.mxu0 0.0
      %2263 = vmatprep.subr.mxu0 0.0
      %2264 = vmatpush1.msra.mxu0 0.0
      %2265 = vmatprep.subr.mxu0 0.0
      %2266 = vmatpush1.msra.mxu0 0.0
      %2267 = vmatprep.subr.mxu0 0.0
      %2268 = vmatpush1.msra.mxu0 0.0
      %2269 = vmatprep.subr.mxu0 0.0
      %2270 = vmatpush1.msra.mxu0 0.0
      %2271 = vmatprep.subr.mxu0 0.0
      %2272 = vmatpush1.msra.mxu0 0.0
      %2273 = vmatprep.subr.mxu0 0.0
      %2274 = vmatpush1.msra.mxu0 0.0
      %2275 = vmatprep.subr.mxu0 0.0
      %2276 = vmatpush1.msra.mxu0 0.0
      %2277 = vmatprep.subr.mxu0 0.0
      %2278 = vmatpush1.msra.mxu0 0.0
      %2279 = vmatprep.subr.mxu0 0.0
      %2280 = vmatpush1.msra.mxu0 0.0
      %2281 = vmatprep.subr.mxu0 0.0
      %2282 = vmatpush1.msra.mxu0 0.0
      %2283 = vmatprep.mubr.f32.mxu0 0.0
      %v2284 = vand.u32 %v2055, 4294901760
      %v2285 = vsub.f32 %v2055, %v2284
      %2286 = vmatmul.mubr.f32.gmra.mrb[0].mxu0 %v2285
      %v2287 = vpop.f32.mrb[0].mxu0
      %v2288 = vadd.f32 %v2212, %v2287
      %v2289 = vpop.f32.mrb[0].mxu0
      %2290 = vdwg.mxu0
      %2291 = vmatprep.subr.mxu0 0.0
      %v2292 = vand.u32 %v2050, 4294901760
      %2293 = vmatpush1.msra.mxu0 %v2292
      %2294 = vmatprep.subr.mxu0 0.0
      %v2295 = vand.u32 %v2051, 4294901760
      %2296 = vmatpush1.msra.mxu0 %v2295
      %2297 = vmatprep.subr.mxu0 0.0
      %2298 = vmatpush1.msra.mxu0 0.0
      %2299 = vmatprep.subr.mxu0 0.0
      %2300 = vmatpush1.msra.mxu0 0.0
      %2301 = vmatprep.subr.mxu0 0.0
      %2302 = vmatpush1.msra.mxu0 0.0
      %2303 = vmatprep.subr.mxu0 0.0
      %2304 = vmatpush1.msra.mxu0 0.0
      %2305 = vmatprep.subr.mxu0 0.0
      %2306 = vmatpush1.msra.mxu0 0.0
      %2307 = vmatprep.subr.mxu0 0.0
      %2308 = vmatpush1.msra.mxu0 0.0
      %2309 = vmatprep.subr.mxu0 0.0
      %2310 = vmatpush1.msra.mxu0 0.0
      %2311 = vmatprep.subr.mxu0 0.0
      %2312 = vmatpush1.msra.mxu0 0.0
      %2313 = vmatprep.subr.mxu0 0.0
      %2314 = vmatpush1.msra.mxu0 0.0
      %2315 = vmatprep.subr.mxu0 0.0
      %2316 = vmatpush1.msra.mxu0 0.0
      %2317 = vmatprep.subr.mxu0 0.0
      %2318 = vmatpush1.msra.mxu0 0.0
      %2319 = vmatprep.subr.mxu0 0.0
      %2320 = vmatpush1.msra.mxu0 0.0
      %2321 = vmatprep.subr.mxu0 0.0
      %2322 = vmatpush1.msra.mxu0 0.0
      %2323 = vmatprep.subr.mxu0 0.0
      %2324 = vmatpush1.msra.mxu0 0.0
      %2325 = vmatprep.subr.mxu0 0.0
      %2326 = vmatpush1.msra.mxu0 0.0
      %2327 = vmatprep.subr.mxu0 0.0
      %2328 = vmatpush1.msra.mxu0 0.0
      %2329 = vmatprep.subr.mxu0 0.0
      %2330 = vmatpush1.msra.mxu0 0.0
      %2331 = vmatprep.subr.mxu0 0.0
      %2332 = vmatpush1.msra.mxu0 0.0
      %2333 = vmatprep.subr.mxu0 0.0
      %2334 = vmatpush1.msra.mxu0 0.0
      %2335 = vmatprep.subr.mxu0 0.0
      %2336 = vmatpush1.msra.mxu0 0.0
      %2337 = vmatprep.subr.mxu0 0.0
      %2338 = vmatpush1.msra.mxu0 0.0
      %2339 = vmatprep.subr.mxu0 0.0
      %2340 = vmatpush1.msra.mxu0 0.0
      %2341 = vmatprep.subr.mxu0 0.0
      %2342 = vmatpush1.msra.mxu0 0.0
      %2343 = vmatprep.subr.mxu0 0.0
      %2344 = vmatpush1.msra.mxu0 0.0
      %2345 = vmatprep.subr.mxu0 0.0
      %2346 = vmatpush1.msra.mxu0 0.0
      %2347 = vmatprep.subr.mxu0 0.0
      %2348 = vmatpush1.msra.mxu0 0.0
      %2349 = vmatprep.subr.mxu0 0.0
      %2350 = vmatpush1.msra.mxu0 0.0
      %2351 = vmatprep.subr.mxu0 0.0
      %2352 = vmatpush1.msra.mxu0 0.0
      %2353 = vmatprep.subr.mxu0 0.0
      %2354 = vmatpush1.msra.mxu0 0.0
      %2355 = vmatprep.subr.mxu0 0.0
      %2356 = vmatpush1.msra.mxu0 0.0
      %2357 = vmatprep.mubr.f32.mxu0 0.0
      %v2358 = vand.u32 %v2055, 4294901760
      %v2359 = vsub.f32 %v2055, %v2358
      %v2360 = vand.u32 %v2359, 4294901760
      %2361 = vmatmul.mubr.f32.gmra.mrb[0].mxu0 %v2360
      %v2362 = vpop.f32.mrb[0].mxu0
      %v2363 = vadd.f32 %v2288, %v2362
      %v2364 = vpop.f32.mrb[0].mxu0
      %2365 = vdwg.mxu0
      %2366 = vmatprep.subr.mxu0 0.0
      %v2367 = vand.u32 %v2050, 4294901760
      %v2368 = vsub.f32 %v2050, %v2367
      %v2369 = vand.u32 %v2368, 4294901760
      %2370 = vmatpush1.msra.mxu0 %v2369
      %2371 = vmatprep.subr.mxu0 0.0
      %v2372 = vand.u32 %v2051, 4294901760
      %v2373 = vsub.f32 %v2051, %v2372
      %v2374 = vand.u32 %v2373, 4294901760
      %2375 = vmatpush1.msra.mxu0 %v2374
      %2376 = vmatprep.subr.mxu0 0.0
      %2377 = vmatpush1.msra.mxu0 0.0
      %2378 = vmatprep.subr.mxu0 0.0
      %2379 = vmatpush1.msra.mxu0 0.0
      %2380 = vmatprep.subr.mxu0 0.0
      %2381 = vmatpush1.msra.mxu0 0.0
      %2382 = vmatprep.subr.mxu0 0.0
      %2383 = vmatpush1.msra.mxu0 0.0
      %2384 = vmatprep.subr.mxu0 0.0
      %2385 = vmatpush1.msra.mxu0 0.0
      %2386 = vmatprep.subr.mxu0 0.0
      %2387 = vmatpush1.msra.mxu0 0.0
      %2388 = vmatprep.subr.mxu0 0.0
      %2389 = vmatpush1.msra.mxu0 0.0
      %2390 = vmatprep.subr.mxu0 0.0
      %2391 = vmatpush1.msra.mxu0 0.0
      %2392 = vmatprep.subr.mxu0 0.0
      %2393 = vmatpush1.msra.mxu0 0.0
      %2394 = vmatprep.subr.mxu0 0.0
      %2395 = vmatpush1.msra.mxu0 0.0
      %2396 = vmatprep.subr.mxu0 0.0
      %2397 = vmatpush1.msra.mxu0 0.0
      %2398 = vmatprep.subr.mxu0 0.0
      %2399 = vmatpush1.msra.mxu0 0.0
      %2400 = vmatprep.subr.mxu0 0.0
      %2401 = vmatpush1.msra.mxu0 0.0
      %2402 = vmatprep.subr.mxu0 0.0
      %2403 = vmatpush1.msra.mxu0 0.0
      %2404 = vmatprep.subr.mxu0 0.0
      %2405 = vmatpush1.msra.mxu0 0.0
      %2406 = vmatprep.subr.mxu0 0.0
      %2407 = vmatpush1.msra.mxu0 0.0
      %2408 = vmatprep.subr.mxu0 0.0
      %2409 = vmatpush1.msra.mxu0 0.0
      %2410 = vmatprep.subr.mxu0 0.0
      %2411 = vmatpush1.msra.mxu0 0.0
      %2412 = vmatprep.subr.mxu0 0.0
      %2413 = vmatpush1.msra.mxu0 0.0
      %2414 = vmatprep.subr.mxu0 0.0
      %2415 = vmatpush1.msra.mxu0 0.0
      %2416 = vmatprep.subr.mxu0 0.0
      %2417 = vmatpush1.msra.mxu0 0.0
      %2418 = vmatprep.subr.mxu0 0.0
      %2419 = vmatpush1.msra.mxu0 0.0
      %2420 = vmatprep.subr.mxu0 0.0
      %2421 = vmatpush1.msra.mxu0 0.0
      %2422 = vmatprep.subr.mxu0 0.0
      %2423 = vmatpush1.msra.mxu0 0.0
      %2424 = vmatprep.subr.mxu0 0.0
      %2425 = vmatpush1.msra.mxu0 0.0
      %2426 = vmatprep.subr.mxu0 0.0
      %2427 = vmatpush1.msra.mxu0 0.0
      %2428 = vmatprep.subr.mxu0 0.0
      %2429 = vmatpush1.msra.mxu0 0.0
      %2430 = vmatprep.subr.mxu0 0.0
      %2431 = vmatpush1.msra.mxu0 0.0
      %2432 = vmatprep.subr.mxu0 0.0
      %2433 = vmatpush1.msra.mxu0 0.0
      %2434 = vmatprep.subr.mxu0 0.0
      %2435 = vmatpush1.msra.mxu0 0.0
      %2436 = vmatprep.mubr.f32.mxu0 0.0
      %v2437 = vand.u32 %v2055, 4294901760
      %2438 = vmatmul.mubr.f32.gmra.mrb[0].mxu0 %v2437
      %v2439 = vpop.f32.mrb[0].mxu0
      %v2440 = vadd.f32 %v2363, %v2439
      %v2441 = vpop.f32.mrb[0].mxu0
      %2442 = vdwg.mxu0
      %2443 = vmatprep.subr.mxu0 0.0
      %v2444 = vand.u32 %v2050, 4294901760
      %2445 = vmatpush1.msra.mxu0 %v2444
      %2446 = vmatprep.subr.mxu0 0.0
      %v2447 = vand.u32 %v2051, 4294901760
      %2448 = vmatpush1.msra.mxu0 %v2447
      %2449 = vmatprep.subr.mxu0 0.0
      %2450 = vmatpush1.msra.mxu0 0.0
      %2451 = vmatprep.subr.mxu0 0.0
      %2452 = vmatpush1.msra.mxu0 0.0
      %2453 = vmatprep.subr.mxu0 0.0
      %2454 = vmatpush1.msra.mxu0 0.0
      %2455 = vmatprep.subr.mxu0 0.0
      %2456 = vmatpush1.msra.mxu0 0.0
      %2457 = vmatprep.subr.mxu0 0.0
      %2458 = vmatpush1.msra.mxu0 0.0
      %2459 = vmatprep.subr.mxu0 0.0
      %2460 = vmatpush1.msra.mxu0 0.0
      %2461 = vmatprep.subr.mxu0 0.0
      %2462 = vmatpush1.msra.mxu0 0.0
      %2463 = vmatprep.subr.mxu0 0.0
      %2464 = vmatpush1.msra.mxu0 0.0
      %2465 = vmatprep.subr.mxu0 0.0
      %2466 = vmatpush1.msra.mxu0 0.0
      %2467 = vmatprep.subr.mxu0 0.0
      %2468 = vmatpush1.msra.mxu0 0.0
      %2469 = vmatprep.subr.mxu0 0.0
      %2470 = vmatpush1.msra.mxu0 0.0
      %2471 = vmatprep.subr.mxu0 0.0
      %2472 = vmatpush1.msra.mxu0 0.0
      %2473 = vmatprep.subr.mxu0 0.0
      %2474 = vmatpush1.msra.mxu0 0.0
      %2475 = vmatprep.subr.mxu0 0.0
      %2476 = vmatpush1.msra.mxu0 0.0
      %2477 = vmatprep.subr.mxu0 0.0
      %2478 = vmatpush1.msra.mxu0 0.0
      %2479 = vmatprep.subr.mxu0 0.0
      %2480 = vmatpush1.msra.mxu0 0.0
      %2481 = vmatprep.subr.mxu0 0.0
      %2482 = vmatpush1.msra.mxu0 0.0
      %2483 = vmatprep.subr.mxu0 0.0
      %2484 = vmatpush1.msra.mxu0 0.0
      %2485 = vmatprep.subr.mxu0 0.0
      %2486 = vmatpush1.msra.mxu0 0.0
      %2487 = vmatprep.subr.mxu0 0.0
      %2488 = vmatpush1.msra.mxu0 0.0
      %2489 = vmatprep.subr.mxu0 0.0
      %2490 = vmatpush1.msra.mxu0 0.0
      %2491 = vmatprep.subr.mxu0 0.0
      %2492 = vmatpush1.msra.mxu0 0.0
      %2493 = vmatprep.subr.mxu0 0.0
      %2494 = vmatpush1.msra.mxu0 0.0
      %2495 = vmatprep.subr.mxu0 0.0
      %2496 = vmatpush1.msra.mxu0 0.0
      %2497 = vmatprep.subr.mxu0 0.0
      %2498 = vmatpush1.msra.mxu0 0.0
      %2499 = vmatprep.subr.mxu0 0.0
      %2500 = vmatpush1.msra.mxu0 0.0
      %2501 = vmatprep.subr.mxu0 0.0
      %2502 = vmatpush1.msra.mxu0 0.0
      %2503 = vmatprep.subr.mxu0 0.0
      %2504 = vmatpush1.msra.mxu0 0.0
      %2505 = vmatprep.subr.mxu0 0.0
      %2506 = vmatpush1.msra.mxu0 0.0
      %2507 = vmatprep.subr.mxu0 0.0
      %2508 = vmatpush1.msra.mxu0 0.0
      %2509 = vmatprep.mubr.f32.mxu0 0.0
      %v2510 = vand.u32 %v2055, 4294901760
      %2511 = vmatmul.mubr.f32.gmra.mrb[0].mxu0 %v2510
      %v2512 = vpop.f32.mrb[0].mxu0
      %v2513 = vadd.f32 %v2440, %v2512
      %v2514 = vpop.f32.mrb[0].mxu0
      %2515 = vdwg.mxu0
      %v2516 = vld [vmem:[%s8] sm:$0xf]
      %2518 = vset.pattern.permute.xlu0 0
      %2519 = vperm.xlu0 %2518, %v2516
      %v2520 = vpop.permute.xlu0 %2519
      %v2522 = vadd.f32 %v2513, %v2520
      %v2524 = vrot.slane %v1529, 4
      %v2526 = vadd.f32 %v2522, %v2524
      %2527 = vst [vmem:[%s361] sm:$0xf] %v2526
      %p2528 = scmp.lt.s32.totalorder %s24, 1
      %s2529 = scalar_select %p2528, %s24, 1
      %p2530 = scmp.lt.s32.totalorder %s25, 0
      %s2531 = scalar_select %p2530, %s25, 0
      %s2532 = sadd.s32 %s2531, %s2529
      %s2533 = smul.addr %s2532, 4
      %s2534 = scalar_lea.vmem %s9, %s2533
      // Predicated region
      $region57: #{downsampling_resblock3d.1} parent=55 // pred_check
        %p2535 = pneg %p248
      $region58: #{downsampling_resblock3d.1} parent=55 // pred_check_branch
        %2537 = sbr.rel (%p2535) target = $region60
      $region59: #{downsampling_resblock3d.1} parent=55 // pred_region
        _
      $region60: #{downsampling_resblock3d.1} parent=55 // pred_fallthru
        _
    $region56: #{downsampling_resblock3d.1} parent=5 // pred_fallthru
      _
    %p2538 = scmp.le.s32.totalorder 2, %s15
    // Predicated region
    $region61: #{downsampling_resblock3d.1} parent=5 // pred_check
      %p2539 = pneg %p2538
    $region62: #{downsampling_resblock3d.1} parent=5 // pred_check_branch
      %2541 = sbr.rel (%p2539) target = $region64
    $region63: #{downsampling_resblock3d.1} parent=5 // pred_region
      %s2542 = ssub.s32 %s15, 2
      // Predicated region
      $region65: #{downsampling_resblock3d.1} parent=63 // pred_check
        %p2543 = pneg %p254
      $region66: #{downsampling_resblock3d.1} parent=63 // pred_check_branch
        %2545 = sbr.rel (%p2543) target = $region68
      $region67: #{downsampling_resblock3d.1} parent=63 // pred_region
        %p2546 = scmp.lt.s32.totalorder %s26, 1
        %s2547 = scalar_select %p2546, %s26, 1
        %p2548 = scmp.lt.s32.totalorder %s27, 0
        %s2549 = scalar_select %p2548, %s27, 0
        %s2550 = sadd.s32 %s2549, %s2547
        %s2551 = smul.addr %s2550, 4
        %s2552 = scalar_lea.vmem %s9, %s2551
      $region68: #{downsampling_resblock3d.1} parent=63 // pred_fallthru
        _
    $region64: #{downsampling_resblock3d.1} parent=5 // pred_fallthru
      _
  $region6: #{downsampling_resblock3d.1} parent=0 // loop_footer
    %s19 = sadd.s32 1, %s15
  $region7: #{downsampling_resblock3d.1} parent=0 // loop_footer_branch
    %14 = sbr.rel target = $region3
  $region8: #{downsampling_resblock3d.1} parent=0 // loop_exit
    _

</llo_original>
